<compile_context>
chip_gen: v7x
topology: tpu7x:2x2x1
jax: 0.10.0
libtpu: 0.0.40
codegen_flags: <defaults>
</compile_context>

<pallas_src>
import functools

import jax
import jax.numpy as jnp
from jax.experimental import pallas as pl
from jax.experimental.pallas import tpu as pltpu

LEAKY_SLOPE = 0.01   # F.leaky_relu default
LN_EPS = 1e-5        # nn.LayerNorm default


def _actor_kernel(max_action,          # bound Python float (compile-time constant)
                  x_ref,
                  w1, a1, w2, a2, w3, a3, w4, a4,
                  w5, b5,
                  out_ref):
    """One (TB, state_dim) batch tile -> (TB, out_pad) actions. All params resident in VMEM.

    w_i : (in, out) bf16, pre-fused main+residual weight (W + Wr)
    a_i : (3, out) f32,  rows = [fused bias (b + br), gamma, beta]
    w5  : (128, out_pad) bf16, b5 : (1, out_pad) f32 (lane-padded to a multiple of 128)
    """

    def block(x_bf16, w_ref, aux_ref):
        # Single fused matmul (main + residual branch) on the MXU, f32 accumulation.
        h = jnp.dot(x_bf16, w_ref[...], preferred_element_type=jnp.float32)
        aux = aux_ref[...]
        h = h + aux[0:1, :]                                   # fused bias (b + br)
        # LayerNorm, single-pass variance E[h^2] - mu^2, clamped to >= 0 (f32).
        mu = jnp.mean(h, axis=-1, keepdims=True)
        var = jnp.maximum(jnp.mean(h * h, axis=-1, keepdims=True) - mu * mu, 0.0)
        hn = (h - mu) * jax.lax.rsqrt(var + LN_EPS)
        hn = hn * aux[1:2, :] + aux[2:3, :]                   # gamma, beta
        act = jnp.maximum(hn, LEAKY_SLOPE * hn)               # leaky_relu (2 VALU ops)
        return act.astype(jnp.bfloat16)                       # bf16 carry -> next MXU lhs

    x = x_ref[...].astype(jnp.bfloat16)
    x = block(x, w1, a1)
    x = block(x, w2, a2)
    x = block(x, w3, a3)
    x = block(x, w4, a4)
    y = jnp.dot(x, w5[...], preferred_element_type=jnp.float32) + b5[...]
    out_ref[...] = jnp.tanh(y) * max_action


def pack_actor_params(params):
    """Fuse residual branches, cast weights to bf16, pack bias/gamma/beta, pad final layer.

    Do this ONCE per weight update (outside the per-step call) so the kernel only ever
    streams ~0.7 MiB of bf16 weights instead of ~2.7 MiB of f32 across 27 DMAs.
    """
    packed = {}
    for i in range(1, 5):
        wf = (params[f"w{i}"] + params[f"wr{i}"]).astype(jnp.bfloat16)
        bf = params[f"b{i}"] + params[f"br{i}"]
        aux = jnp.concatenate([bf, params[f"g{i}"], params[f"be{i}"]],
                              axis=0).astype(jnp.float32)     # (3, out)
        packed[f"w{i}"] = wf
        packed[f"a{i}"] = aux
    w5, b5 = params["w5"], params["b5"]
    act_dim = w5.shape[1]
    out_pad = ((act_dim + 127) // 128) * 128                  # lane-dense output store
    pad = out_pad - act_dim
    packed["w5"] = jnp.pad(w5, ((0, 0), (0, pad))).astype(jnp.bfloat16)
    packed["b5"] = jnp.pad(b5, ((0, 0), (0, pad))).astype(jnp.float32)
    # TODO(synk): on v7x, w2..w4 could be stored fp8 e4m3 (MXU-native there) to halve weight bytes.
    return packed


def actor_forward(state, packed, max_action, action_dim, *, block_batch=256):
    """state: (B, state_dim) f32 -> (B, action_dim) f32.

    block_batch: batch tile (use 256 on v6e/v7x, 128 on v5e). Weights are grid-invariant
    (constant index_map) so they stay resident in VMEM across all batch tiles.
    """
    B, state_dim = state.shape
    out_pad = packed["w5"].shape[1]

    # Batch tile: at least 8 (sublane), at most block_batch; pad B to a multiple of TB.
    TB = min(block_batch, max(8, ((B + 7) // 8) * 8))
    B_pad = ((B + TB - 1) // TB) * TB
    if B_pad != B:
        state = jnp.pad(state, ((0, B_pad - B), (0, 0)))
    grid = (B_pad // TB,)

    flat_params = [
        packed["w1"], packed["a1"],
        packed["w2"], packed["a2"],
        packed["w3"], packed["a3"],
        packed["w4"], packed["a4"],
        packed["w5"], packed["b5"],
    ]

    # Full-shape blocks with constant index_map -> weights resident across grid steps.
    param_specs = [pl.BlockSpec(p.shape, lambda i: (0, 0)) for p in flat_params]
    in_specs = [pl.BlockSpec((TB, state_dim), lambda i: (i, 0))] + param_specs

    kernel = functools.partial(_actor_kernel, float(max_action))

    out = pl.pallas_call(
        kernel,
        out_shape=jax.ShapeDtypeStruct((B_pad, out_pad), jnp.float32),
        grid=grid,
        in_specs=in_specs,
        out_specs=pl.BlockSpec((TB, out_pad), lambda i: (i, 0)),
        compiler_params=pltpu.CompilerParams(
            dimension_semantics=("parallel",),        # dual-TC batch split on v7x
            vmem_limit_bytes=16 << 20),
    )(state, *flat_params)
    return out[:B, :action_dim]


def _init_linear(key, fan_in, fan_out):
    """PyTorch-default-style init: U(-1/sqrt(fan_in), 1/sqrt(fan_in))."""
    kw, kb = jax.random.split(key)
    bound = 1.0 / jnp.sqrt(fan_in)
    w = jax.random.uniform(kw, (fan_in, fan_out), jnp.float32, -bound, bound)
    b = jax.random.uniform(kb, (1, fan_out), jnp.float32, -bound, bound)
    return w, b


def init_actor_params(key, state_dim, action_dim):
    dims = [state_dim, 512, 384, 256, 128]
    keys = jax.random.split(key, 9)
    params = {}
    for i in range(4):
        w, b = _init_linear(keys[2 * i], dims[i], dims[i + 1])
        wr, br = _init_linear(keys[2 * i + 1], dims[i], dims[i + 1])
        params[f"w{i+1}"] = w
        params[f"b{i+1}"] = b
        params[f"wr{i+1}"] = wr
        params[f"br{i+1}"] = br
        params[f"g{i+1}"] = jnp.ones((1, dims[i + 1]), jnp.float32)    # LayerNorm gamma
        params[f"be{i+1}"] = jnp.zeros((1, dims[i + 1]), jnp.float32)  # LayerNorm beta
    w5, b5 = _init_linear(keys[8], 128, action_dim)
    params["w5"] = w5
    params["b5"] = b5
    return params


def actor_reference(state, params, max_action):
    """Pure-JAX f32 reference matching the original PyTorch forward exactly."""
    x = state
    for i in range(1, 5):
        out = x @ params[f"w{i}"] + params[f"b{i}"]
        ident = x @ params[f"wr{i}"] + params[f"br{i}"]
        h = out + ident
        mu = jnp.mean(h, axis=-1, keepdims=True)
        var = jnp.mean((h - mu) ** 2, axis=-1, keepdims=True)
        hn = (h - mu) / jnp.sqrt(var + LN_EPS)
        hn = hn * params[f"g{i}"] + params[f"be{i}"]
        x = jnp.where(hn >= 0, hn, LEAKY_SLOPE * hn)
    y = x @ params["w5"] + params["b5"]
    return jnp.tanh(y) * max_action


def actor_reference_quantized(state, packed, max_action):
    """Pure-JAX reference using the same fused/bf16 packed params and bf16 activation carry."""
    x = state.astype(jnp.bfloat16)
    for i in range(1, 5):
        aux = packed[f"a{i}"]
        h = jnp.dot(x, packed[f"w{i}"], preferred_element_type=jnp.float32) + aux[0:1, :]
        mu = jnp.mean(h, axis=-1, keepdims=True)
        var = jnp.maximum(jnp.mean(h * h, axis=-1, keepdims=True) - mu * mu, 0.0)
        hn = (h - mu) * jax.lax.rsqrt(var + LN_EPS)
        hn = hn * aux[1:2, :] + aux[2:3, :]
        x = jnp.maximum(hn, LEAKY_SLOPE * hn).astype(jnp.bfloat16)
    y = jnp.dot(x, packed["w5"], preferred_element_type=jnp.float32) + packed["b5"]
    return jnp.tanh(y) * max_action


if __name__ == "__main__":
    state_dim = 16
    action_dim = 8
    max_action = 2.0

    key = jax.random.PRNGKey(0)
    kp, kx1, kx2 = jax.random.split(key, 3)
    params = init_actor_params(kp, state_dim, action_dim)
    packed = pack_actor_params(params)

    # --- Small "acting" batch (single grid step, batch padded to a sublane multiple) ---
    batch = 8
    state = jax.random.normal(kx1, (batch, state_dim), jnp.float32)
    out = jax.block_until_ready(actor_forward(state, packed, max_action, action_dim))
    assert out.shape == (batch, action_dim)

    ref_q = actor_reference_quantized(state, packed, max_action)[:, :action_dim]
    assert jnp.allclose(out, ref_q, atol=2e-3, rtol=2e-3), "mismatch vs quantized reference"

    ref_f32 = actor_reference(state, params, max_action)
    assert jnp.allclose(out, ref_f32, atol=5e-2, rtol=5e-2), "mismatch vs f32 reference"

    # --- Multi-step batch grid (exercises resident weights + batch padding + parallel grid) ---
    batch2 = 40
    state2 = jax.random.normal(kx2, (batch2, state_dim), jnp.float32)
    out2 = jax.block_until_ready(
        actor_forward(state2, packed, max_action, action_dim, block_batch=16))
    assert out2.shape == (batch2, action_dim)

    ref2_q = actor_reference_quantized(state2, packed, max_action)[:, :action_dim]
    assert jnp.allclose(out2, ref2_q, atol=2e-3, rtol=2e-3), "mismatch vs quantized reference (grid)"

    ref2_f32 = actor_reference(state2, params, max_action)
    assert jnp.allclose(out2, ref2_f32, atol=5e-2, rtol=5e-2), "mismatch vs f32 reference (grid)"

    print("KERNEL_OK")
</pallas_src>

<mosaic_0001>
module attributes {stable_mosaic.version = 11 : i64} {
  func.func @_actor_kernel(%arg0: i32, %arg1: memref<8x16xf32, #tpu.memory_space<vmem>>, %arg2: memref<16x512xbf16, #tpu.memory_space<vmem>>, %arg3: memref<3x512xf32, #tpu.memory_space<vmem>>, %arg4: memref<512x384xbf16, #tpu.memory_space<vmem>>, %arg5: memref<3x384xf32, #tpu.memory_space<vmem>>, %arg6: memref<384x256xbf16, #tpu.memory_space<vmem>>, %arg7: memref<3x256xf32, #tpu.memory_space<vmem>>, %arg8: memref<256x128xbf16, #tpu.memory_space<vmem>>, %arg9: memref<3x128xf32, #tpu.memory_space<vmem>>, %arg10: memref<128x128xbf16, #tpu.memory_space<vmem>>, %arg11: memref<1x128xf32, #tpu.memory_space<vmem>>, %arg12: memref<8x128xf32, #tpu.memory_space<vmem>>) attributes {dimension_semantics = [#tpu.dimension_semantics<parallel>], iteration_bounds = array<i64: 1>, scalar_prefetch = 0 : i64, scratch_operands = 0 : i64, tpu.core_type = #tpu.core_type<tc>, window_params = [{transform_indices = @transform_0, window_bounds = array<i64: 8, 16>}, {pipeline_mode = #tpu.pipeline_mode<synchronous>, transform_indices = @transform_1, window_bounds = array<i64: 16, 512>}, {pipeline_mode = #tpu.pipeline_mode<synchronous>, transform_indices = @transform_2, window_bounds = array<i64: 3, 512>}, {pipeline_mode = #tpu.pipeline_mode<synchronous>, transform_indices = @transform_3, window_bounds = array<i64: 512, 384>}, {pipeline_mode = #tpu.pipeline_mode<synchronous>, transform_indices = @transform_4, window_bounds = array<i64: 3, 384>}, {pipeline_mode = #tpu.pipeline_mode<synchronous>, transform_indices = @transform_5, window_bounds = array<i64: 384, 256>}, {pipeline_mode = #tpu.pipeline_mode<synchronous>, transform_indices = @transform_6, window_bounds = array<i64: 3, 256>}, {pipeline_mode = #tpu.pipeline_mode<synchronous>, transform_indices = @transform_7, window_bounds = array<i64: 256, 128>}, {pipeline_mode = #tpu.pipeline_mode<synchronous>, transform_indices = @transform_8, window_bounds = array<i64: 3, 128>}, {pipeline_mode = #tpu.pipeline_mode<synchronous>, transform_indices = @transform_9, window_bounds = array<i64: 128, 128>}, {pipeline_mode = #tpu.pipeline_mode<synchronous>, transform_indices = @transform_10, window_bounds = array<i64: 1, 128>}, {transform_indices = @transform_11, window_bounds = array<i64: 8, 128>}]} {
    %c0 = arith.constant 0 : index
    %c0_0 = arith.constant 0 : index
    %0 = vector.load %arg1[%c0, %c0_0] : memref<8x16xf32, #tpu.memory_space<vmem>>, vector<8x16xf32>
    %1 = arith.truncf %0 : vector<8x16xf32> to vector<8x16xbf16>
    %c0_1 = arith.constant 0 : index
    %c0_2 = arith.constant 0 : index
    %2 = vector.load %arg2[%c0_1, %c0_2] : memref<16x512xbf16, #tpu.memory_space<vmem>>, vector<16x512xbf16>
    %cst = arith.constant dense<0.000000e+00> : vector<8x512xf32>
    %3 = tpu.matmul %1, %2, %cst {dimension_numbers = #tpu.dot_dimension_numbers<[1], [0], [0], [1], [0, 0, 1, 1], [], []>} : vector<8x16xbf16>, vector<16x512xbf16>, vector<8x512xf32> -> vector<8x512xf32>
    %c0_3 = arith.constant 0 : index
    %c0_4 = arith.constant 0 : index
    %4 = vector.load %arg3[%c0_3, %c0_4] : memref<3x512xf32, #tpu.memory_space<vmem>>, vector<3x512xf32>
    %5 = vector.extract_strided_slice %4 {offsets = [0, 0], sizes = [1, 512], strides = [1, 1]} : vector<3x512xf32> to vector<1x512xf32>
    %6 = vector.broadcast %5 : vector<1x512xf32> to vector<8x512xf32>
    %7 = arith.addf %3, %6 : vector<8x512xf32>
    %cst_5 = arith.constant dense<0.000000e+00> : vector<8xf32>
    %8 = vector.multi_reduction <add>, %7, %cst_5 [1] : vector<8x512xf32> to vector<8xf32>
    %9 = vector.shape_cast %8 : vector<8xf32> to vector<8x1xf32>
    %cst_6 = arith.constant 5.120000e+02 : f32
    %10 = vector.broadcast %cst_6 : f32 to vector<8x1xf32>
    %11 = arith.divf %9, %10 : vector<8x1xf32>
    %12 = arith.mulf %7, %7 : vector<8x512xf32>
    %cst_7 = arith.constant dense<0.000000e+00> : vector<8xf32>
    %13 = vector.multi_reduction <add>, %12, %cst_7 [1] : vector<8x512xf32> to vector<8xf32>
    %14 = vector.shape_cast %13 : vector<8xf32> to vector<8x1xf32>
    %cst_8 = arith.constant 5.120000e+02 : f32
    %15 = vector.broadcast %cst_8 : f32 to vector<8x1xf32>
    %16 = arith.divf %14, %15 : vector<8x1xf32>
    %17 = arith.mulf %11, %11 : vector<8x1xf32>
    %18 = arith.subf %16, %17 : vector<8x1xf32>
    %cst_9 = arith.constant 0.000000e+00 : f32
    %19 = vector.broadcast %cst_9 : f32 to vector<8x1xf32>
    %20 = arith.maximumf %18, %19 : vector<8x1xf32>
    %21 = vector.broadcast %11 : vector<8x1xf32> to vector<8x512xf32>
    %22 = arith.subf %7, %21 : vector<8x512xf32>
    %cst_10 = arith.constant 9.99999974E-6 : f32
    %23 = vector.broadcast %cst_10 : f32 to vector<8x1xf32>
    %24 = arith.addf %20, %23 : vector<8x1xf32>
    %25 = math.rsqrt %24 : vector<8x1xf32>
    %26 = vector.broadcast %25 : vector<8x1xf32> to vector<8x512xf32>
    %27 = arith.mulf %22, %26 : vector<8x512xf32>
    %28 = vector.extract_strided_slice %4 {offsets = [1, 0], sizes = [1, 512], strides = [1, 1]} : vector<3x512xf32> to vector<1x512xf32>
    %29 = vector.broadcast %28 : vector<1x512xf32> to vector<8x512xf32>
    %30 = arith.mulf %27, %29 : vector<8x512xf32>
    %31 = vector.extract_strided_slice %4 {offsets = [2, 0], sizes = [1, 512], strides = [1, 1]} : vector<3x512xf32> to vector<1x512xf32>
    %32 = vector.broadcast %31 : vector<1x512xf32> to vector<8x512xf32>
    %33 = arith.addf %30, %32 : vector<8x512xf32>
    %cst_11 = arith.constant 0.00999999977 : f32
    %34 = vector.broadcast %cst_11 : f32 to vector<8x512xf32>
    %35 = arith.mulf %34, %33 : vector<8x512xf32>
    %36 = arith.maximumf %33, %35 : vector<8x512xf32>
    %37 = arith.truncf %36 : vector<8x512xf32> to vector<8x512xbf16>
    %c0_12 = arith.constant 0 : index
    %c0_13 = arith.constant 0 : index
    %38 = vector.load %arg4[%c0_12, %c0_13] : memref<512x384xbf16, #tpu.memory_space<vmem>>, vector<512x384xbf16>
    %cst_14 = arith.constant dense<0.000000e+00> : vector<8x384xf32>
    %39 = tpu.matmul %37, %38, %cst_14 {dimension_numbers = #tpu.dot_dimension_numbers<[1], [0], [0], [1], [0, 0, 1, 1], [], []>} : vector<8x512xbf16>, vector<512x384xbf16>, vector<8x384xf32> -> vector<8x384xf32>
    %c0_15 = arith.constant 0 : index
    %c0_16 = arith.constant 0 : index
    %40 = vector.load %arg5[%c0_15, %c0_16] : memref<3x384xf32, #tpu.memory_space<vmem>>, vector<3x384xf32>
    %41 = vector.extract_strided_slice %40 {offsets = [0, 0], sizes = [1, 384], strides = [1, 1]} : vector<3x384xf32> to vector<1x384xf32>
    %42 = vector.broadcast %41 : vector<1x384xf32> to vector<8x384xf32>
    %43 = arith.addf %39, %42 : vector<8x384xf32>
    %cst_17 = arith.constant dense<0.000000e+00> : vector<8xf32>
    %44 = vector.multi_reduction <add>, %43, %cst_17 [1] : vector<8x384xf32> to vector<8xf32>
    %45 = vector.shape_cast %44 : vector<8xf32> to vector<8x1xf32>
    %cst_18 = arith.constant 3.840000e+02 : f32
    %46 = vector.broadcast %cst_18 : f32 to vector<8x1xf32>
    %47 = arith.divf %45, %46 : vector<8x1xf32>
    %48 = arith.mulf %43, %43 : vector<8x384xf32>
    %cst_19 = arith.constant dense<0.000000e+00> : vector<8xf32>
    %49 = vector.multi_reduction <add>, %48, %cst_19 [1] : vector<8x384xf32> to vector<8xf32>
    %50 = vector.shape_cast %49 : vector<8xf32> to vector<8x1xf32>
    %cst_20 = arith.constant 3.840000e+02 : f32
    %51 = vector.broadcast %cst_20 : f32 to vector<8x1xf32>
    %52 = arith.divf %50, %51 : vector<8x1xf32>
    %53 = arith.mulf %47, %47 : vector<8x1xf32>
    %54 = arith.subf %52, %53 : vector<8x1xf32>
    %cst_21 = arith.constant 0.000000e+00 : f32
    %55 = vector.broadcast %cst_21 : f32 to vector<8x1xf32>
    %56 = arith.maximumf %54, %55 : vector<8x1xf32>
    %57 = vector.broadcast %47 : vector<8x1xf32> to vector<8x384xf32>
    %58 = arith.subf %43, %57 : vector<8x384xf32>
    %cst_22 = arith.constant 9.99999974E-6 : f32
    %59 = vector.broadcast %cst_22 : f32 to vector<8x1xf32>
    %60 = arith.addf %56, %59 : vector<8x1xf32>
    %61 = math.rsqrt %60 : vector<8x1xf32>
    %62 = vector.broadcast %61 : vector<8x1xf32> to vector<8x384xf32>
    %63 = arith.mulf %58, %62 : vector<8x384xf32>
    %64 = vector.extract_strided_slice %40 {offsets = [1, 0], sizes = [1, 384], strides = [1, 1]} : vector<3x384xf32> to vector<1x384xf32>
    %65 = vector.broadcast %64 : vector<1x384xf32> to vector<8x384xf32>
    %66 = arith.mulf %63, %65 : vector<8x384xf32>
    %67 = vector.extract_strided_slice %40 {offsets = [2, 0], sizes = [1, 384], strides = [1, 1]} : vector<3x384xf32> to vector<1x384xf32>
    %68 = vector.broadcast %67 : vector<1x384xf32> to vector<8x384xf32>
    %69 = arith.addf %66, %68 : vector<8x384xf32>
    %cst_23 = arith.constant 0.00999999977 : f32
    %70 = vector.broadcast %cst_23 : f32 to vector<8x384xf32>
    %71 = arith.mulf %70, %69 : vector<8x384xf32>
    %72 = arith.maximumf %69, %71 : vector<8x384xf32>
    %73 = arith.truncf %72 : vector<8x384xf32> to vector<8x384xbf16>
    %c0_24 = arith.constant 0 : index
    %c0_25 = arith.constant 0 : index
    %74 = vector.load %arg6[%c0_24, %c0_25] : memref<384x256xbf16, #tpu.memory_space<vmem>>, vector<384x256xbf16>
    %cst_26 = arith.constant dense<0.000000e+00> : vector<8x256xf32>
    %75 = tpu.matmul %73, %74, %cst_26 {dimension_numbers = #tpu.dot_dimension_numbers<[1], [0], [0], [1], [0, 0, 1, 1], [], []>} : vector<8x384xbf16>, vector<384x256xbf16>, vector<8x256xf32> -> vector<8x256xf32>
    %c0_27 = arith.constant 0 : index
    %c0_28 = arith.constant 0 : index
    %76 = vector.load %arg7[%c0_27, %c0_28] : memref<3x256xf32, #tpu.memory_space<vmem>>, vector<3x256xf32>
    %77 = vector.extract_strided_slice %76 {offsets = [0, 0], sizes = [1, 256], strides = [1, 1]} : vector<3x256xf32> to vector<1x256xf32>
    %78 = vector.broadcast %77 : vector<1x256xf32> to vector<8x256xf32>
    %79 = arith.addf %75, %78 : vector<8x256xf32>
    %cst_29 = arith.constant dense<0.000000e+00> : vector<8xf32>
    %80 = vector.multi_reduction <add>, %79, %cst_29 [1] : vector<8x256xf32> to vector<8xf32>
    %81 = vector.shape_cast %80 : vector<8xf32> to vector<8x1xf32>
    %cst_30 = arith.constant 2.560000e+02 : f32
    %82 = vector.broadcast %cst_30 : f32 to vector<8x1xf32>
    %83 = arith.divf %81, %82 : vector<8x1xf32>
    %84 = arith.mulf %79, %79 : vector<8x256xf32>
    %cst_31 = arith.constant dense<0.000000e+00> : vector<8xf32>
    %85 = vector.multi_reduction <add>, %84, %cst_31 [1] : vector<8x256xf32> to vector<8xf32>
    %86 = vector.shape_cast %85 : vector<8xf32> to vector<8x1xf32>
    %cst_32 = arith.constant 2.560000e+02 : f32
    %87 = vector.broadcast %cst_32 : f32 to vector<8x1xf32>
    %88 = arith.divf %86, %87 : vector<8x1xf32>
    %89 = arith.mulf %83, %83 : vector<8x1xf32>
    %90 = arith.subf %88, %89 : vector<8x1xf32>
    %cst_33 = arith.constant 0.000000e+00 : f32
    %91 = vector.broadcast %cst_33 : f32 to vector<8x1xf32>
    %92 = arith.maximumf %90, %91 : vector<8x1xf32>
    %93 = vector.broadcast %83 : vector<8x1xf32> to vector<8x256xf32>
    %94 = arith.subf %79, %93 : vector<8x256xf32>
    %cst_34 = arith.constant 9.99999974E-6 : f32
    %95 = vector.broadcast %cst_34 : f32 to vector<8x1xf32>
    %96 = arith.addf %92, %95 : vector<8x1xf32>
    %97 = math.rsqrt %96 : vector<8x1xf32>
    %98 = vector.broadcast %97 : vector<8x1xf32> to vector<8x256xf32>
    %99 = arith.mulf %94, %98 : vector<8x256xf32>
    %100 = vector.extract_strided_slice %76 {offsets = [1, 0], sizes = [1, 256], strides = [1, 1]} : vector<3x256xf32> to vector<1x256xf32>
    %101 = vector.broadcast %100 : vector<1x256xf32> to vector<8x256xf32>
    %102 = arith.mulf %99, %101 : vector<8x256xf32>
    %103 = vector.extract_strided_slice %76 {offsets = [2, 0], sizes = [1, 256], strides = [1, 1]} : vector<3x256xf32> to vector<1x256xf32>
    %104 = vector.broadcast %103 : vector<1x256xf32> to vector<8x256xf32>
    %105 = arith.addf %102, %104 : vector<8x256xf32>
    %cst_35 = arith.constant 0.00999999977 : f32
    %106 = vector.broadcast %cst_35 : f32 to vector<8x256xf32>
    %107 = arith.mulf %106, %105 : vector<8x256xf32>
    %108 = arith.maximumf %105, %107 : vector<8x256xf32>
    %109 = arith.truncf %108 : vector<8x256xf32> to vector<8x256xbf16>
    %c0_36 = arith.constant 0 : index
    %c0_37 = arith.constant 0 : index
    %110 = vector.load %arg8[%c0_36, %c0_37] : memref<256x128xbf16, #tpu.memory_space<vmem>>, vector<256x128xbf16>
    %cst_38 = arith.constant dense<0.000000e+00> : vector<8x128xf32>
    %111 = tpu.matmul %109, %110, %cst_38 {dimension_numbers = #tpu.dot_dimension_numbers<[1], [0], [0], [1], [0, 0, 1, 1], [], []>} : vector<8x256xbf16>, vector<256x128xbf16>, vector<8x128xf32> -> vector<8x128xf32>
    %c0_39 = arith.constant 0 : index
    %c0_40 = arith.constant 0 : index
    %112 = vector.load %arg9[%c0_39, %c0_40] : memref<3x128xf32, #tpu.memory_space<vmem>>, vector<3x128xf32>
    %113 = vector.extract_strided_slice %112 {offsets = [0, 0], sizes = [1, 128], strides = [1, 1]} : vector<3x128xf32> to vector<1x128xf32>
    %114 = vector.broadcast %113 : vector<1x128xf32> to vector<8x128xf32>
    %115 = arith.addf %111, %114 : vector<8x128xf32>
    %cst_41 = arith.constant dense<0.000000e+00> : vector<8xf32>
    %116 = vector.multi_reduction <add>, %115, %cst_41 [1] : vector<8x128xf32> to vector<8xf32>
    %117 = vector.shape_cast %116 : vector<8xf32> to vector<8x1xf32>
    %cst_42 = arith.constant 1.280000e+02 : f32
    %118 = vector.broadcast %cst_42 : f32 to vector<8x1xf32>
    %119 = arith.divf %117, %118 : vector<8x1xf32>
    %120 = arith.mulf %115, %115 : vector<8x128xf32>
    %cst_43 = arith.constant dense<0.000000e+00> : vector<8xf32>
    %121 = vector.multi_reduction <add>, %120, %cst_43 [1] : vector<8x128xf32> to vector<8xf32>
    %122 = vector.shape_cast %121 : vector<8xf32> to vector<8x1xf32>
    %cst_44 = arith.constant 1.280000e+02 : f32
    %123 = vector.broadcast %cst_44 : f32 to vector<8x1xf32>
    %124 = arith.divf %122, %123 : vector<8x1xf32>
    %125 = arith.mulf %119, %119 : vector<8x1xf32>
    %126 = arith.subf %124, %125 : vector<8x1xf32>
    %cst_45 = arith.constant 0.000000e+00 : f32
    %127 = vector.broadcast %cst_45 : f32 to vector<8x1xf32>
    %128 = arith.maximumf %126, %127 : vector<8x1xf32>
    %129 = vector.broadcast %119 : vector<8x1xf32> to vector<8x128xf32>
    %130 = arith.subf %115, %129 : vector<8x128xf32>
    %cst_46 = arith.constant 9.99999974E-6 : f32
    %131 = vector.broadcast %cst_46 : f32 to vector<8x1xf32>
    %132 = arith.addf %128, %131 : vector<8x1xf32>
    %133 = math.rsqrt %132 : vector<8x1xf32>
    %134 = vector.broadcast %133 : vector<8x1xf32> to vector<8x128xf32>
    %135 = arith.mulf %130, %134 : vector<8x128xf32>
    %136 = vector.extract_strided_slice %112 {offsets = [1, 0], sizes = [1, 128], strides = [1, 1]} : vector<3x128xf32> to vector<1x128xf32>
    %137 = vector.broadcast %136 : vector<1x128xf32> to vector<8x128xf32>
    %138 = arith.mulf %135, %137 : vector<8x128xf32>
    %139 = vector.extract_strided_slice %112 {offsets = [2, 0], sizes = [1, 128], strides = [1, 1]} : vector<3x128xf32> to vector<1x128xf32>
    %140 = vector.broadcast %139 : vector<1x128xf32> to vector<8x128xf32>
    %141 = arith.addf %138, %140 : vector<8x128xf32>
    %cst_47 = arith.constant 0.00999999977 : f32
    %142 = vector.broadcast %cst_47 : f32 to vector<8x128xf32>
    %143 = arith.mulf %142, %141 : vector<8x128xf32>
    %144 = arith.maximumf %141, %143 : vector<8x128xf32>
    %145 = arith.truncf %144 : vector<8x128xf32> to vector<8x128xbf16>
    %c0_48 = arith.constant 0 : index
    %c0_49 = arith.constant 0 : index
    %146 = vector.load %arg10[%c0_48, %c0_49] : memref<128x128xbf16, #tpu.memory_space<vmem>>, vector<128x128xbf16>
    %cst_50 = arith.constant dense<0.000000e+00> : vector<8x128xf32>
    %147 = tpu.matmul %145, %146, %cst_50 {dimension_numbers = #tpu.dot_dimension_numbers<[1], [0], [0], [1], [0, 0, 1, 1], [], []>} : vector<8x128xbf16>, vector<128x128xbf16>, vector<8x128xf32> -> vector<8x128xf32>
    %c0_51 = arith.constant 0 : index
    %c0_52 = arith.constant 0 : index
    %148 = vector.load %arg11[%c0_51, %c0_52] : memref<1x128xf32, #tpu.memory_space<vmem>>, vector<1x128xf32>
    %149 = vector.broadcast %148 : vector<1x128xf32> to vector<8x128xf32>
    %150 = arith.addf %147, %149 : vector<8x128xf32>
    %151 = math.tanh %150 : vector<8x128xf32>
    %cst_53 = arith.constant 2.000000e+00 : f32
    %152 = vector.broadcast %cst_53 : f32 to vector<8x128xf32>
    %153 = arith.mulf %151, %152 : vector<8x128xf32>
    %c0_54 = arith.constant 0 : index
    %c0_55 = arith.constant 0 : index
    %154 = vector.load %arg12[%c0_54, %c0_55] : memref<8x128xf32, #tpu.memory_space<vmem>>, vector<8x128xf32>
    tpu.vector_store %arg12[%c0_54, %c0_55], %153 {strides = array<i32>} : memref<8x128xf32, #tpu.memory_space<vmem>>, vector<8x128xf32>,
    return
  }
  func.func @transform_0(%arg0: i32) -> (i32, i32) {
    %c0_i32 = arith.constant 0 : i32
    %c0_i32_0 = arith.constant 0 : i32
    return %arg0, %c0_i32 : i32, i32
  }
  func.func @transform_1(%arg0: i32) -> (i32, i32) {
    %c0_i32 = arith.constant 0 : i32
    %c0_i32_0 = arith.constant 0 : i32
    %c0_i32_1 = arith.constant 0 : i32
    return %c0_i32, %c0_i32_0 : i32, i32
  }
  func.func @transform_2(%arg0: i32) -> (i32, i32) {
    %c0_i32 = arith.constant 0 : i32
    %c0_i32_0 = arith.constant 0 : i32
    %c0_i32_1 = arith.constant 0 : i32
    return %c0_i32, %c0_i32_0 : i32, i32
  }
  func.func @transform_3(%arg0: i32) -> (i32, i32) {
    %c0_i32 = arith.constant 0 : i32
    %c0_i32_0 = arith.constant 0 : i32
    %c0_i32_1 = arith.constant 0 : i32
    return %c0_i32, %c0_i32_0 : i32, i32
  }
  func.func @transform_4(%arg0: i32) -> (i32, i32) {
    %c0_i32 = arith.constant 0 : i32
    %c0_i32_0 = arith.constant 0 : i32
    %c0_i32_1 = arith.constant 0 : i32
    return %c0_i32, %c0_i32_0 : i32, i32
  }
  func.func @transform_5(%arg0: i32) -> (i32, i32) {
    %c0_i32 = arith.constant 0 : i32
    %c0_i32_0 = arith.constant 0 : i32
    %c0_i32_1 = arith.constant 0 : i32
    return %c0_i32, %c0_i32_0 : i32, i32
  }
  func.func @transform_6(%arg0: i32) -> (i32, i32) {
    %c0_i32 = arith.constant 0 : i32
    %c0_i32_0 = arith.constant 0 : i32
    %c0_i32_1 = arith.constant 0 : i32
    return %c0_i32, %c0_i32_0 : i32, i32
  }
  func.func @transform_7(%arg0: i32) -> (i32, i32) {
    %c0_i32 = arith.constant 0 : i32
    %c0_i32_0 = arith.constant 0 : i32
    %c0_i32_1 = arith.constant 0 : i32
    return %c0_i32, %c0_i32_0 : i32, i32
  }
  func.func @transform_8(%arg0: i32) -> (i32, i32) {
    %c0_i32 = arith.constant 0 : i32
    %c0_i32_0 = arith.constant 0 : i32
    %c0_i32_1 = arith.constant 0 : i32
    return %c0_i32, %c0_i32_0 : i32, i32
  }
  func.func @transform_9(%arg0: i32) -> (i32, i32) {
    %c0_i32 = arith.constant 0 : i32
    %c0_i32_0 = arith.constant 0 : i32
    %c0_i32_1 = arith.constant 0 : i32
    return %c0_i32, %c0_i32_0 : i32, i32
  }
  func.func @transform_10(%arg0: i32) -> (i32, i32) {
    %c0_i32 = arith.constant 0 : i32
    %c0_i32_0 = arith.constant 0 : i32
    %c0_i32_1 = arith.constant 0 : i32
    return %c0_i32, %c0_i32_0 : i32, i32
  }
  func.func @transform_11(%arg0: i32) -> (i32, i32) {
    %c0_i32 = arith.constant 0 : i32
    %c0_i32_0 = arith.constant 0 : i32
    return %arg0, %c0_i32 : i32, i32
  }
}

</mosaic_0001>

<llo_original>
// kernel: tpu_custom_call.1
$region0: #{tpu_custom_call.1}
  #allocation0 [shape = 'u32[]', space=smem, size = 0x4, offset = 0x4, fixed_abs, tag = 'smem constant byte address 0x4 - core index']
  #allocation1 [shape = 'u32[144,128]{1,0:T(1,128)}', space=vmem, size = 0x12000, scoped, tag = 'internal scratch']
  %s0 = inlined_call_operand.hbm [shape: f32[8,16], index: 0, kind: input, shape index: {}]
  %s1 = inlined_call_operand.hbm [shape: bf16[16,512], index: 1, kind: input, shape index: {}]
  %s2 = inlined_call_operand.hbm [shape: f32[3,512], index: 2, kind: input, shape index: {}]
  %s3 = inlined_call_operand.hbm [shape: bf16[512,384], index: 3, kind: input, shape index: {}]
  %s4 = inlined_call_operand.vmem [shape: f32[3,384], index: 4, kind: input, shape index: {}]
  %s5 = inlined_call_operand.hbm [shape: bf16[384,256], index: 5, kind: input, shape index: {}]
  %s6 = inlined_call_operand.vmem [shape: f32[3,256], index: 6, kind: input, shape index: {}]
  %s7 = inlined_call_operand.hbm [shape: bf16[256,128], index: 7, kind: input, shape index: {}]
  %s8 = inlined_call_operand.vmem [shape: f32[3,128], index: 8, kind: input, shape index: {}]
  %s9 = inlined_call_operand.hbm [shape: bf16[128,128], index: 9, kind: input, shape index: {}]
  %s10 = inlined_call_operand.vmem [shape: f32[1,128], index: 10, kind: input, shape index: {}]
  %s11 = inlined_call_operand.hbm [shape: f32[8,128], index: 11, kind: output, shape index: {}]
  %s12 = sld [smem:[#allocation0]]
  $region82: #{tpu_custom_call.1} parent=0
    _
  %s14 = ssub.s32 1, %s12
  %s15 = scalar_select 0, %s14, %s12
  $region1: #{tpu_custom_call.1} parent=0
    #allocation2 [shape = 'u8[4096]{0}', space=vmem, size = 0x1000, scoped, tag = 'input window, operand 0, single buffered']
    #allocation3 [shape = 's32[1]{0}', space=sflag, size = 0x4, scoped, tag = 'scoped memory for tpu_custom_call.1']
    #allocation4 [shape = 's32[1]{0}', space=sflag, size = 0x4, scoped, tag = 'scoped memory for tpu_custom_call.1']
    #allocation5 [shape = 'u8[16384]{0}', space=vmem, size = 0x4000, scoped, tag = 'input window, operand 1, single buffered']
    #allocation6 [shape = 's32[1]{0}', space=sflag, size = 0x4, scoped, tag = 'scoped memory for tpu_custom_call.1']
    #allocation7 [shape = 'u8[8192]{0}', space=vmem, size = 0x2000, scoped, tag = 'input window, operand 2, single buffered']
    #allocation8 [shape = 'u8[393216]{0}', space=vmem, size = 0x60000, scoped, tag = 'input window, operand 3, single buffered']
    #allocation9 [shape = 's32[1]{0}', space=sflag, size = 0x4, scoped, tag = 'scoped memory for tpu_custom_call.1']
    #allocation10 [shape = 'u8[196608]{0}', space=vmem, size = 0x30000, scoped, tag = 'input window, operand 5, single buffered']
    #allocation11 [shape = 'u8[65536]{0}', space=vmem, size = 0x10000, scoped, tag = 'input window, operand 7, single buffered']
    #allocation12 [shape = 's32[1]{0}', space=sflag, size = 0x4, scoped, tag = 'scoped memory for tpu_custom_call.1']
    #allocation13 [shape = 'u8[32768]{0}', space=vmem, size = 0x8000, scoped, tag = 'input window, operand 9, single buffered']
    #allocation14 [shape = 'u8[4096]{0}', space=vmem, size = 0x1000, scoped, tag = 'output window, operand 0, single buffered']
    %16 = vsyncpa [#allocation3], 0
    %17 = vsyncpa [#allocation6], 0
    %18 = vsyncpa [#allocation9], 0
    %19 = vsyncpa [#allocation12], 0
    %20 = vsyncpa [#allocation4], 0
    // Predicated region
    $region2: #{tpu_custom_call.1} parent=1 // pred_check
      _
    $region3: #{tpu_custom_call.1} parent=1 // pred_check_branch
      %22 = sbr.rel (0) target = $region5
    $region4: #{tpu_custom_call.1} parent=1 // pred_region
      %s24 = ssub.s32 128, 128
      %25 = vsyncadd [#allocation3], %s24
      %s27 = sshll.u32 [#allocation2], 4
      %s28 = int_to_ptr.vmem [resolvable:$true] %s27
      %30 = dma.hbm_to_vmem [thread:$0]  %s0, 128, %s28, [#allocation3]
    $region5: #{tpu_custom_call.1} parent=1 // pred_fallthru
      _
    // Predicated region
    $region6: #{tpu_custom_call.1} parent=1 // pred_check
      _
    $region7: #{tpu_custom_call.1} parent=1 // pred_check_branch
      %32 = sbr.rel (0) target = $region9
    $region8: #{tpu_custom_call.1} parent=1 // pred_region
      %s34 = ssub.s32 512, 512
      %35 = vsyncadd [#allocation6], %s34
      %s36 = sshll.u32 [#allocation5], 4
      %s37 = int_to_ptr.vmem [resolvable:$true] %s36
      %42 = dma.hbm_to_vmem [thread:$0]  %s1, 512, %s37, [#allocation6], 256, 256, 16
    $region9: #{tpu_custom_call.1} parent=1 // pred_fallthru
      _
    // Predicated region
    $region10: #{tpu_custom_call.1} parent=1 // pred_check
      _
    $region11: #{tpu_custom_call.1} parent=1 // pred_check_branch
      %44 = sbr.rel (0) target = $region13
    $region12: #{tpu_custom_call.1} parent=1 // pred_region
      %s46 = ssub.s32 256, 256
      %47 = vsyncadd [#allocation6], %s46
      %s49 = sshll.u32 [#allocation7], 4
      %s50 = int_to_ptr.vmem [resolvable:$true] %s49
      %52 = dma.hbm_to_vmem [thread:$0]  %s2, 256, %s50, [#allocation6]
    $region13: #{tpu_custom_call.1} parent=1 // pred_fallthru
      _
    // Predicated region
    $region14: #{tpu_custom_call.1} parent=1 // pred_check
      _
    $region15: #{tpu_custom_call.1} parent=1 // pred_check_branch
      %54 = sbr.rel (0) target = $region17
    $region16: #{tpu_custom_call.1} parent=1 // pred_region
      %s56 = ssub.s32 12288, 12288
      %57 = vsyncadd [#allocation9], %s56
      %s58 = sshll.u32 [#allocation8], 4
      %s59 = int_to_ptr.vmem [resolvable:$true] %s58
      %64 = dma.hbm_to_vmem [thread:$0]  %s3, 12288, %s59, [#allocation9], 192, 192, 12
    $region17: #{tpu_custom_call.1} parent=1 // pred_fallthru
      _
    // Predicated region
    $region18: #{tpu_custom_call.1} parent=1 // pred_check
      _
    $region19: #{tpu_custom_call.1} parent=1 // pred_check_branch
      %66 = sbr.rel (0) target = $region21
    $region20: #{tpu_custom_call.1} parent=1 // pred_region
      _
    $region21: #{tpu_custom_call.1} parent=1 // pred_fallthru
      _
    // Predicated region
    $region22: #{tpu_custom_call.1} parent=1 // pred_check
      _
    $region23: #{tpu_custom_call.1} parent=1 // pred_check_branch
      %68 = sbr.rel (0) target = $region25
    $region24: #{tpu_custom_call.1} parent=1 // pred_region
      %s70 = ssub.s32 6144, 6144
      %71 = vsyncadd [#allocation9], %s70
      %s72 = sshll.u32 [#allocation10], 4
      %s73 = int_to_ptr.vmem [resolvable:$true] %s72
      %78 = dma.hbm_to_vmem [thread:$0]  %s5, 6144, %s73, [#allocation9], 128, 128, 8
    $region25: #{tpu_custom_call.1} parent=1 // pred_fallthru
      _
    // Predicated region
    $region26: #{tpu_custom_call.1} parent=1 // pred_check
      _
    $region27: #{tpu_custom_call.1} parent=1 // pred_check_branch
      %80 = sbr.rel (0) target = $region29
    $region28: #{tpu_custom_call.1} parent=1 // pred_region
      _
    $region29: #{tpu_custom_call.1} parent=1 // pred_fallthru
      _
    // Predicated region
    $region30: #{tpu_custom_call.1} parent=1 // pred_check
      _
    $region31: #{tpu_custom_call.1} parent=1 // pred_check_branch
      %82 = sbr.rel (0) target = $region33
    $region32: #{tpu_custom_call.1} parent=1 // pred_region
      %s84 = ssub.s32 2048, 2048
      %85 = vsyncadd [#allocation12], %s84
      %s86 = sshll.u32 [#allocation11], 4
      %s87 = int_to_ptr.vmem [resolvable:$true] %s86
      %92 = dma.hbm_to_vmem [thread:$0]  %s7, 2048, %s87, [#allocation12], 64, 64, 4
    $region33: #{tpu_custom_call.1} parent=1 // pred_fallthru
      _
    // Predicated region
    $region34: #{tpu_custom_call.1} parent=1 // pred_check
      _
    $region35: #{tpu_custom_call.1} parent=1 // pred_check_branch
      %94 = sbr.rel (0) target = $region37
    $region36: #{tpu_custom_call.1} parent=1 // pred_region
      _
    $region37: #{tpu_custom_call.1} parent=1 // pred_fallthru
      _
    // Predicated region
    $region38: #{tpu_custom_call.1} parent=1 // pred_check
      _
    $region39: #{tpu_custom_call.1} parent=1 // pred_check_branch
      %96 = sbr.rel (0) target = $region41
    $region40: #{tpu_custom_call.1} parent=1 // pred_region
      %s98 = ssub.s32 1024, 1024
      %99 = vsyncadd [#allocation12], %s98
      %s100 = sshll.u32 [#allocation13], 4
      %s101 = int_to_ptr.vmem [resolvable:$true] %s100
      %106 = dma.hbm_to_vmem [thread:$0]  %s9, 1024, %s101, [#allocation12], 64, 64, 4
    $region41: #{tpu_custom_call.1} parent=1 // pred_fallthru
      _
    // Predicated region
    $region42: #{tpu_custom_call.1} parent=1 // pred_check
      _
    $region43: #{tpu_custom_call.1} parent=1 // pred_check_branch
      %108 = sbr.rel (0) target = $region45
    $region44: #{tpu_custom_call.1} parent=1 // pred_region
      _
    $region45: #{tpu_custom_call.1} parent=1 // pred_fallthru
      _
    // Predicated region
    $region46: #{tpu_custom_call.1} parent=1 // pred_check
      _
    $region47: #{tpu_custom_call.1} parent=1 // pred_check_branch
      %110 = sbr.rel (0) target = $region49
    $region48: #{tpu_custom_call.1} parent=1 // pred_region
      %111 = dma.done [#allocation3], 128
    $region49: #{tpu_custom_call.1} parent=1 // pred_fallthru
      _
    // Predicated region
    $region50: #{tpu_custom_call.1} parent=1 // pred_check
      _
    $region51: #{tpu_custom_call.1} parent=1 // pred_check_branch
      %113 = sbr.rel (0) target = $region53
    $region52: #{tpu_custom_call.1} parent=1 // pred_region
      %114 = dma.done [#allocation6], 512
    $region53: #{tpu_custom_call.1} parent=1 // pred_fallthru
      _
    // Predicated region
    $region54: #{tpu_custom_call.1} parent=1 // pred_check
      _
    $region55: #{tpu_custom_call.1} parent=1 // pred_check_branch
      %116 = sbr.rel (0) target = $region57
    $region56: #{tpu_custom_call.1} parent=1 // pred_region
      %117 = dma.done [#allocation6], 256
    $region57: #{tpu_custom_call.1} parent=1 // pred_fallthru
      _
    // Predicated region
    $region58: #{tpu_custom_call.1} parent=1 // pred_check
      _
    $region59: #{tpu_custom_call.1} parent=1 // pred_check_branch
      %119 = sbr.rel (0) target = $region61
    $region60: #{tpu_custom_call.1} parent=1 // pred_region
      %120 = dma.done [#allocation9], 12288
    $region61: #{tpu_custom_call.1} parent=1 // pred_fallthru
      _
    // Predicated region
    $region62: #{tpu_custom_call.1} parent=1 // pred_check
      _
    $region63: #{tpu_custom_call.1} parent=1 // pred_check_branch
      %122 = sbr.rel (0) target = $region65
    $region64: #{tpu_custom_call.1} parent=1 // pred_region
      %123 = dma.done [#allocation9], 6144
    $region65: #{tpu_custom_call.1} parent=1 // pred_fallthru
      _
    // Predicated region
    $region66: #{tpu_custom_call.1} parent=1 // pred_check
      _
    $region67: #{tpu_custom_call.1} parent=1 // pred_check_branch
      %125 = sbr.rel (0) target = $region69
    $region68: #{tpu_custom_call.1} parent=1 // pred_region
      %126 = dma.done [#allocation12], 2048
    $region69: #{tpu_custom_call.1} parent=1 // pred_fallthru
      _
    // Predicated region
    $region70: #{tpu_custom_call.1} parent=1 // pred_check
      _
    $region71: #{tpu_custom_call.1} parent=1 // pred_check_branch
      %128 = sbr.rel (0) target = $region73
    $region72: #{tpu_custom_call.1} parent=1 // pred_region
      %129 = dma.done [#allocation12], 1024
    $region73: #{tpu_custom_call.1} parent=1 // pred_fallthru
      _
    %v131 = vld [vmem:[#allocation2] sm:$0xff]
    %v132 = vpack.c.bf16 %v131, %v131
    %v133 = vld [vmem:[#allocation5] sm:$0xff]
    %v134 = vld [vmem:[#allocation5 + $0x8] sm:$0xff]
    %v135 = vld [vmem:[#allocation5 + $0x10] sm:$0xff]
    %v136 = vld [vmem:[#allocation5 + $0x18] sm:$0xff]
    %v137 = vld [vmem:[#allocation7] sm:$0x77]
    %v138 = vld [vmem:[#allocation7 + $0x8] sm:$0x77]
    %v141 = vlaneseq
    %v142 = vshrl.u32 %v141, 7
    %v143 = vsub.s32 0, %v142
    %v144 = vrot.slane %v137, %v143
    %v145 = vlaneseq
    %v146 = vshrl.u32 %v145, 7
    %v147 = vsub.s32 4, %v146
    %v148 = vrot.slane %v137, %v147
    %v149 = vlaneseq
    %v150 = vshrl.u32 %v149, 7
    %v151 = vsub.s32 0, %v150
    %v152 = vrot.slane %v138, %v151
    %v153 = vlaneseq
    %v154 = vshrl.u32 %v153, 7
    %v155 = vsub.s32 4, %v154
    %v156 = vrot.slane %v138, %v155
    %v161 = vlaneseq
    %v162 = vshrl.u32 %v161, 7
    %v163 = vsub.s32 0, %v162
    %v164 = vrot.slane %v144, %v163
    %v165 = vlaneseq
    %v166 = vshrl.u32 %v165, 7
    %v167 = vsub.s32 0, %v166
    %v168 = vrot.slane %v148, %v167
    %v169 = vlaneseq
    %v170 = vshrl.u32 %v169, 7
    %v171 = vsub.s32 0, %v170
    %v172 = vrot.slane %v152, %v171
    %v173 = vlaneseq
    %v174 = vshrl.u32 %v173, 7
    %v175 = vsub.s32 0, %v174
    %v176 = vrot.slane %v156, %v175
    %v181 = vunpack.c.l.b16 %v133
    %v182 = vunpack.c.h.b16 %v133
    %v183 = vunpack.c.l.b16 %v134
    %v184 = vunpack.c.h.b16 %v134
    %v185 = vunpack.c.l.b16 %v135
    %v186 = vunpack.c.h.b16 %v135
    %v187 = vunpack.c.l.b16 %v136
    %v188 = vunpack.c.h.b16 %v136
    %v189 = vpack.c.b16 %v185, %v181
    %v190 = vpack.c.b16 %v186, %v182
    %v191 = vpack.c.b16 %v187, %v183
    %v192 = vpack.c.b16 %v188, %v184
    %vm197 = vcmask 130048
    %v199 = vsel %vm197, %v132, 0
    %201 = vmatprep.subr.bf16.mxu0 %v190
    %202 = vmatpush1.bf16.msra.mxu0 %v189
    %203 = vmatprep.subr.bf16.mxu0 0
    %204 = vmatpush1.bf16.msra.mxu0 0
    %205 = vmatprep.subr.bf16.mxu0 0
    %206 = vmatpush1.bf16.msra.mxu0 0
    %207 = vmatprep.subr.bf16.mxu0 0
    %208 = vmatpush1.bf16.msra.mxu0 0
    %209 = vmatprep.subr.bf16.mxu0 0
    %210 = vmatpush1.bf16.msra.mxu0 0
    %211 = vmatprep.subr.bf16.mxu0 0
    %212 = vmatpush1.bf16.msra.mxu0 0
    %213 = vmatprep.subr.bf16.mxu0 0
    %214 = vmatpush1.bf16.msra.mxu0 0
    %215 = vmatprep.subr.bf16.mxu0 0
    %216 = vmatpush1.bf16.msra.mxu0 0
    %217 = vmatprep.subr.bf16.mxu0 0
    %218 = vmatpush1.bf16.msra.mxu0 0
    %219 = vmatprep.subr.bf16.mxu0 0
    %220 = vmatpush1.bf16.msra.mxu0 0
    %221 = vmatprep.subr.bf16.mxu0 0
    %222 = vmatpush1.bf16.msra.mxu0 0
    %223 = vmatprep.subr.bf16.mxu0 0
    %224 = vmatpush1.bf16.msra.mxu0 0
    %225 = vmatprep.subr.bf16.mxu0 0
    %226 = vmatpush1.bf16.msra.mxu0 0
    %227 = vmatprep.subr.bf16.mxu0 0
    %228 = vmatpush1.bf16.msra.mxu0 0
    %229 = vmatprep.subr.bf16.mxu0 0
    %230 = vmatpush1.bf16.msra.mxu0 0
    %231 = vmatprep.subr.bf16.mxu0 0
    %232 = vmatpush1.bf16.msra.mxu0 0
    %233 = vmatprep.mubr.bf16.mxu0 0
    %234 = vmatmul.mubr.bf16.gmra.mrb[0].mxu0 %v199
    %v235 = vpop.f32.mrb[0].mxu0
    %v236 = vadd.f32 %v164, %v235
    %v237 = vpop.f32.mrb[0].mxu0
    %v238 = vadd.f32 %v168, %v237
    %v239 = vpop.f32.mrb[0].mxu0
    %v240 = vpop.f32.mrb[0].mxu0
    %241 = vdwg.mxu0
    %242 = vmatprep.subr.bf16.mxu0 %v192
    %243 = vmatpush1.bf16.msra.mxu0 %v191
    %244 = vmatprep.subr.bf16.mxu0 0
    %245 = vmatpush1.bf16.msra.mxu0 0
    %246 = vmatprep.subr.bf16.mxu0 0
    %247 = vmatpush1.bf16.msra.mxu0 0
    %248 = vmatprep.subr.bf16.mxu0 0
    %249 = vmatpush1.bf16.msra.mxu0 0
    %250 = vmatprep.subr.bf16.mxu0 0
    %251 = vmatpush1.bf16.msra.mxu0 0
    %252 = vmatprep.subr.bf16.mxu0 0
    %253 = vmatpush1.bf16.msra.mxu0 0
    %254 = vmatprep.subr.bf16.mxu0 0
    %255 = vmatpush1.bf16.msra.mxu0 0
    %256 = vmatprep.subr.bf16.mxu0 0
    %257 = vmatpush1.bf16.msra.mxu0 0
    %258 = vmatprep.subr.bf16.mxu0 0
    %259 = vmatpush1.bf16.msra.mxu0 0
    %260 = vmatprep.subr.bf16.mxu0 0
    %261 = vmatpush1.bf16.msra.mxu0 0
    %262 = vmatprep.subr.bf16.mxu0 0
    %263 = vmatpush1.bf16.msra.mxu0 0
    %264 = vmatprep.subr.bf16.mxu0 0
    %265 = vmatpush1.bf16.msra.mxu0 0
    %266 = vmatprep.subr.bf16.mxu0 0
    %267 = vmatpush1.bf16.msra.mxu0 0
    %268 = vmatprep.subr.bf16.mxu0 0
    %269 = vmatpush1.bf16.msra.mxu0 0
    %270 = vmatprep.subr.bf16.mxu0 0
    %271 = vmatpush1.bf16.msra.mxu0 0
    %272 = vmatprep.subr.bf16.mxu0 0
    %273 = vmatpush1.bf16.msra.mxu0 0
    %274 = vmatprep.mubr.bf16.mxu0 0
    %275 = vmatmul.mubr.bf16.gmra.mrb[0].mxu0 %v199
    %v276 = vpop.f32.mrb[0].mxu0
    %v277 = vadd.f32 %v172, %v276
    %v278 = vpop.f32.mrb[0].mxu0
    %v279 = vadd.f32 %v176, %v278
    %v280 = vpop.f32.mrb[0].mxu0
    %v281 = vpop.f32.mrb[0].mxu0
    %282 = vdwg.mxu0
    %v283 = vadd.f32 %v236, %v238
    %v284 = vadd.f32 %v283, %v277
    %v285 = vadd.f32 %v284, %v279
    %286 = vadd.xlane.f32.xlu0 %v285
    %v287 = vpop.xlane.xlu0 %286
    %v288 = vrcp.pop 512.0
    %v289 = vmul.f32 %v287, %v288
    %v290 = vmul.f32 %v236, %v236
    %v291 = vmul.f32 %v238, %v238
    %v292 = vmul.f32 %v277, %v277
    %v293 = vmul.f32 %v279, %v279
    %v294 = vadd.f32 %v290, %v291
    %v295 = vadd.f32 %v294, %v292
    %v296 = vadd.f32 %v295, %v293
    %297 = vadd.xlane.f32.xlu0 %v296
    %v298 = vpop.xlane.xlu0 %297
    %v299 = vmul.f32 %v298, %v288
    %v300 = vmul.f32 %v289, %v289
    %v301 = vsub.f32 %v299, %v300
    %v302 = vmax.f32 %v301, 0.0
    %v303 = vsub.f32 %v236, %v289
    %v304 = vsub.f32 %v238, %v289
    %v305 = vsub.f32 %v277, %v289
    %v306 = vsub.f32 %v279, %v289
    %v307 = vadd.f32 %v302, 1e-05
    %v308 = vrsqrt.pop %v307
    %v309 = vmul.f32 %v303, %v308
    %v310 = vmul.f32 %v304, %v308
    %v311 = vmul.f32 %v305, %v308
    %v312 = vmul.f32 %v306, %v308
    %v313 = vlaneseq
    %v314 = vshrl.u32 %v313, 7
    %v315 = vsub.s32 1, %v314
    %v316 = vrot.slane %v137, %v315
    %v317 = vlaneseq
    %v318 = vshrl.u32 %v317, 7
    %v319 = vsub.s32 5, %v318
    %v320 = vrot.slane %v137, %v319
    %v321 = vlaneseq
    %v322 = vshrl.u32 %v321, 7
    %v323 = vsub.s32 1, %v322
    %v324 = vrot.slane %v138, %v323
    %v325 = vlaneseq
    %v326 = vshrl.u32 %v325, 7
    %v327 = vsub.s32 5, %v326
    %v328 = vrot.slane %v138, %v327
    %v333 = vlaneseq
    %v334 = vshrl.u32 %v333, 7
    %v335 = vsub.s32 1, %v334
    %v336 = vrot.slane %v316, %v335
    %v337 = vlaneseq
    %v338 = vshrl.u32 %v337, 7
    %v339 = vsub.s32 1, %v338
    %v340 = vrot.slane %v320, %v339
    %v341 = vlaneseq
    %v342 = vshrl.u32 %v341, 7
    %v343 = vsub.s32 1, %v342
    %v344 = vrot.slane %v324, %v343
    %v345 = vlaneseq
    %v346 = vshrl.u32 %v345, 7
    %v347 = vsub.s32 1, %v346
    %v348 = vrot.slane %v328, %v347
    %v349 = vmul.f32 %v309, %v336
    %v350 = vmul.f32 %v310, %v340
    %v351 = vmul.f32 %v311, %v344
    %v352 = vmul.f32 %v312, %v348
    %v353 = vlaneseq
    %v354 = vshrl.u32 %v353, 7
    %v355 = vsub.s32 2, %v354
    %v356 = vrot.slane %v137, %v355
    %v357 = vlaneseq
    %v358 = vshrl.u32 %v357, 7
    %v359 = vsub.s32 6, %v358
    %v360 = vrot.slane %v137, %v359
    %v361 = vlaneseq
    %v362 = vshrl.u32 %v361, 7
    %v363 = vsub.s32 2, %v362
    %v364 = vrot.slane %v138, %v363
    %v365 = vlaneseq
    %v366 = vshrl.u32 %v365, 7
    %v367 = vsub.s32 6, %v366
    %v368 = vrot.slane %v138, %v367
    %v373 = vlaneseq
    %v374 = vshrl.u32 %v373, 7
    %v375 = vsub.s32 2, %v374
    %v376 = vrot.slane %v356, %v375
    %v377 = vlaneseq
    %v378 = vshrl.u32 %v377, 7
    %v379 = vsub.s32 2, %v378
    %v380 = vrot.slane %v360, %v379
    %v381 = vlaneseq
    %v382 = vshrl.u32 %v381, 7
    %v383 = vsub.s32 2, %v382
    %v384 = vrot.slane %v364, %v383
    %v385 = vlaneseq
    %v386 = vshrl.u32 %v385, 7
    %v387 = vsub.s32 2, %v386
    %v388 = vrot.slane %v368, %v387
    %v389 = vadd.f32 %v349, %v376
    %v390 = vadd.f32 %v350, %v380
    %v391 = vadd.f32 %v351, %v384
    %v392 = vadd.f32 %v352, %v388
    %v393 = vmul.f32 %v389, 0.01
    %v394 = vmul.f32 %v390, 0.01
    %v395 = vmul.f32 %v391, 0.01
    %v396 = vmul.f32 %v392, 0.01
    %v397 = vmax.f32 %v389, %v393
    %v398 = vmax.f32 %v390, %v394
    %v399 = vmax.f32 %v391, %v395
    %v400 = vmax.f32 %v392, %v396
    %v401 = vpack.c.bf16 %v397, %v397
    %v402 = vpack.c.bf16 %v398, %v398
    %v403 = vpack.c.bf16 %v399, %v399
    %v404 = vpack.c.bf16 %v400, %v400
    %v405 = vld [vmem:[#allocation8] sm:$0xff]
    %v406 = vld [vmem:[#allocation8 + $0x8] sm:$0xf]
    %v407 = vld [vmem:[#allocation8 + $0xc] sm:$0xff]
    %v408 = vld [vmem:[#allocation8 + $0x14] sm:$0xf]
    %v409 = vld [vmem:[#allocation8 + $0x18] sm:$0xff]
    %v410 = vld [vmem:[#allocation8 + $0x20] sm:$0xf]
    %v411 = vld [vmem:[#allocation8 + $0x24] sm:$0xff]
    %v412 = vld [vmem:[#allocation8 + $0x2c] sm:$0xf]
    %v413 = vld [vmem:[#allocation8 + $0x30] sm:$0xff]
    %v414 = vld [vmem:[#allocation8 + $0x38] sm:$0xf]
    %v415 = vld [vmem:[#allocation8 + $0x3c] sm:$0xff]
    %v416 = vld [vmem:[#allocation8 + $0x44] sm:$0xf]
    %v417 = vld [vmem:[#allocation8 + $0x48] sm:$0xff]
    %v418 = vld [vmem:[#allocation8 + $0x50] sm:$0xf]
    %v419 = vld [vmem:[#allocation8 + $0x54] sm:$0xff]
    %v420 = vld [vmem:[#allocation8 + $0x5c] sm:$0xf]
    %v421 = vld [vmem:[#allocation8 + $0x60] sm:$0xff]
    %v422 = vld [vmem:[#allocation8 + $0x68] sm:$0xf]
    %v423 = vld [vmem:[#allocation8 + $0x6c] sm:$0xff]
    %v424 = vld [vmem:[#allocation8 + $0x74] sm:$0xf]
    %v425 = vld [vmem:[#allocation8 + $0x78] sm:$0xff]
    %v426 = vld [vmem:[#allocation8 + $0x80] sm:$0xf]
    %v427 = vld [vmem:[#allocation8 + $0x84] sm:$0xff]
    %v428 = vld [vmem:[#allocation8 + $0x8c] sm:$0xf]
    %v429 = vld [vmem:[#allocation8 + $0x90] sm:$0xff]
    %v430 = vld [vmem:[#allocation8 + $0x98] sm:$0xf]
    %v431 = vld [vmem:[#allocation8 + $0x9c] sm:$0xff]
    %v432 = vld [vmem:[#allocation8 + $0xa4] sm:$0xf]
    %v433 = vld [vmem:[#allocation8 + $0xa8] sm:$0xff]
    %v434 = vld [vmem:[#allocation8 + $0xb0] sm:$0xf]
    %v435 = vld [vmem:[#allocation8 + $0xb4] sm:$0xff]
    %v436 = vld [vmem:[#allocation8 + $0xbc] sm:$0xf]
    %v437 = vld [vmem:[#allocation8 + $0xc0] sm:$0xff]
    %v438 = vld [vmem:[#allocation8 + $0xc8] sm:$0xf]
    %v439 = vld [vmem:[#allocation8 + $0xcc] sm:$0xff]
    %v440 = vld [vmem:[#allocation8 + $0xd4] sm:$0xf]
    %v441 = vld [vmem:[#allocation8 + $0xd8] sm:$0xff]
    %v442 = vld [vmem:[#allocation8 + $0xe0] sm:$0xf]
    %v443 = vld [vmem:[#allocation8 + $0xe4] sm:$0xff]
    %v444 = vld [vmem:[#allocation8 + $0xec] sm:$0xf]
    %v445 = vld [vmem:[#allocation8 + $0xf0] sm:$0xff]
    %v446 = vld [vmem:[#allocation8 + $0xf8] sm:$0xf]
    %v447 = vld [vmem:[#allocation8 + $0xfc] sm:$0xff]
    %v448 = vld [vmem:[#allocation8 + $0x104] sm:$0xf]
    %v449 = vld [vmem:[#allocation8 + $0x108] sm:$0xff]
    %v450 = vld [vmem:[#allocation8 + $0x110] sm:$0xf]
    %v451 = vld [vmem:[#allocation8 + $0x114] sm:$0xff]
    %v452 = vld [vmem:[#allocation8 + $0x11c] sm:$0xf]
    %v453 = vld [vmem:[#allocation8 + $0x120] sm:$0xff]
    %v454 = vld [vmem:[#allocation8 + $0x128] sm:$0xf]
    %v455 = vld [vmem:[#allocation8 + $0x12c] sm:$0xff]
    %v456 = vld [vmem:[#allocation8 + $0x134] sm:$0xf]
    %v457 = vld [vmem:[#allocation8 + $0x138] sm:$0xff]
    %v458 = vld [vmem:[#allocation8 + $0x140] sm:$0xf]
    %v459 = vld [vmem:[#allocation8 + $0x144] sm:$0xff]
    %v460 = vld [vmem:[#allocation8 + $0x14c] sm:$0xf]
    %v461 = vld [vmem:[#allocation8 + $0x150] sm:$0xff]
    %v462 = vld [vmem:[#allocation8 + $0x158] sm:$0xf]
    %v463 = vld [vmem:[#allocation8 + $0x15c] sm:$0xff]
    %v464 = vld [vmem:[#allocation8 + $0x164] sm:$0xf]
    %v465 = vld [vmem:[#allocation8 + $0x168] sm:$0xff]
    %v466 = vld [vmem:[#allocation8 + $0x170] sm:$0xf]
    %v467 = vld [vmem:[#allocation8 + $0x174] sm:$0xff]
    %v468 = vld [vmem:[#allocation8 + $0x17c] sm:$0xf]
    %v469 = vld [vmem:[#allocation8 + $0x180] sm:$0xff]
    %v470 = vld [vmem:[#allocation8 + $0x188] sm:$0xf]
    %v471 = vld [vmem:[#allocation8 + $0x18c] sm:$0xff]
    %v472 = vld [vmem:[#allocation8 + $0x194] sm:$0xf]
    %v473 = vld [vmem:[#allocation8 + $0x198] sm:$0xff]
    %v474 = vld [vmem:[#allocation8 + $0x1a0] sm:$0xf]
    %v475 = vld [vmem:[#allocation8 + $0x1a4] sm:$0xff]
    %v476 = vld [vmem:[#allocation8 + $0x1ac] sm:$0xf]
    %v477 = vld [vmem:[#allocation8 + $0x1b0] sm:$0xff]
    %v478 = vld [vmem:[#allocation8 + $0x1b8] sm:$0xf]
    %v479 = vld [vmem:[#allocation8 + $0x1bc] sm:$0xff]
    %v480 = vld [vmem:[#allocation8 + $0x1c4] sm:$0xf]
    %v481 = vld [vmem:[#allocation8 + $0x1c8] sm:$0xff]
    %v482 = vld [vmem:[#allocation8 + $0x1d0] sm:$0xf]
    %v483 = vld [vmem:[#allocation8 + $0x1d4] sm:$0xff]
    %v484 = vld [vmem:[#allocation8 + $0x1dc] sm:$0xf]
    %v485 = vld [vmem:[#allocation8 + $0x1e0] sm:$0xff]
    %v486 = vld [vmem:[#allocation8 + $0x1e8] sm:$0xf]
    %v487 = vld [vmem:[#allocation8 + $0x1ec] sm:$0xff]
    %v488 = vld [vmem:[#allocation8 + $0x1f4] sm:$0xf]
    %v489 = vld [vmem:[#allocation8 + $0x1f8] sm:$0xff]
    %v490 = vld [vmem:[#allocation8 + $0x200] sm:$0xf]
    %v491 = vld [vmem:[#allocation8 + $0x204] sm:$0xff]
    %v492 = vld [vmem:[#allocation8 + $0x20c] sm:$0xf]
    %v493 = vld [vmem:[#allocation8 + $0x210] sm:$0xff]
    %v494 = vld [vmem:[#allocation8 + $0x218] sm:$0xf]
    %v495 = vld [vmem:[#allocation8 + $0x21c] sm:$0xff]
    %v496 = vld [vmem:[#allocation8 + $0x224] sm:$0xf]
    %v497 = vld [vmem:[#allocation8 + $0x228] sm:$0xff]
    %v498 = vld [vmem:[#allocation8 + $0x230] sm:$0xf]
    %v499 = vld [vmem:[#allocation8 + $0x234] sm:$0xff]
    %v500 = vld [vmem:[#allocation8 + $0x23c] sm:$0xf]
    %v501 = vld [vmem:[#allocation8 + $0x240] sm:$0xff]
    %v502 = vld [vmem:[#allocation8 + $0x248] sm:$0xf]
    %v503 = vld [vmem:[#allocation8 + $0x24c] sm:$0xff]
    %v504 = vld [vmem:[#allocation8 + $0x254] sm:$0xf]
    %v505 = vld [vmem:[#allocation8 + $0x258] sm:$0xff]
    %v506 = vld [vmem:[#allocation8 + $0x260] sm:$0xf]
    %v507 = vld [vmem:[#allocation8 + $0x264] sm:$0xff]
    %v508 = vld [vmem:[#allocation8 + $0x26c] sm:$0xf]
    %v509 = vld [vmem:[#allocation8 + $0x270] sm:$0xff]
    %v510 = vld [vmem:[#allocation8 + $0x278] sm:$0xf]
    %v511 = vld [vmem:[#allocation8 + $0x27c] sm:$0xff]
    %v512 = vld [vmem:[#allocation8 + $0x284] sm:$0xf]
    %v513 = vld [vmem:[#allocation8 + $0x288] sm:$0xff]
    %v514 = vld [vmem:[#allocation8 + $0x290] sm:$0xf]
    %v515 = vld [vmem:[#allocation8 + $0x294] sm:$0xff]
    %v516 = vld [vmem:[#allocation8 + $0x29c] sm:$0xf]
    %v517 = vld [vmem:[#allocation8 + $0x2a0] sm:$0xff]
    %v518 = vld [vmem:[#allocation8 + $0x2a8] sm:$0xf]
    %v519 = vld [vmem:[#allocation8 + $0x2ac] sm:$0xff]
    %v520 = vld [vmem:[#allocation8 + $0x2b4] sm:$0xf]
    %v521 = vld [vmem:[#allocation8 + $0x2b8] sm:$0xff]
    %v522 = vld [vmem:[#allocation8 + $0x2c0] sm:$0xf]
    %v523 = vld [vmem:[#allocation8 + $0x2c4] sm:$0xff]
    %v524 = vld [vmem:[#allocation8 + $0x2cc] sm:$0xf]
    %v525 = vld [vmem:[#allocation8 + $0x2d0] sm:$0xff]
    %v526 = vld [vmem:[#allocation8 + $0x2d8] sm:$0xf]
    %v527 = vld [vmem:[#allocation8 + $0x2dc] sm:$0xff]
    %v528 = vld [vmem:[#allocation8 + $0x2e4] sm:$0xf]
    %v529 = vld [vmem:[#allocation8 + $0x2e8] sm:$0xff]
    %v530 = vld [vmem:[#allocation8 + $0x2f0] sm:$0xf]
    %v531 = vld [vmem:[#allocation8 + $0x2f4] sm:$0xff]
    %v532 = vld [vmem:[#allocation8 + $0x2fc] sm:$0xf]
    %v533 = vld [vmem:[%s4] sm:$0x77]
    %v534 = vld [vmem:[%s4 + $0x8] sm:$0x7]
    %v537 = vlaneseq
    %v538 = vshrl.u32 %v537, 7
    %v539 = vsub.s32 0, %v538
    %v540 = vrot.slane %v533, %v539
    %v541 = vlaneseq
    %v542 = vshrl.u32 %v541, 7
    %v543 = vsub.s32 4, %v542
    %v544 = vrot.slane %v533, %v543
    %v545 = vlaneseq
    %v546 = vshrl.u32 %v545, 7
    %v547 = vsub.s32 0, %v546
    %v548 = vrot.slane %v534, %v547
    %v552 = vlaneseq
    %v553 = vshrl.u32 %v552, 7
    %v554 = vsub.s32 0, %v553
    %v555 = vrot.slane %v540, %v554
    %v556 = vlaneseq
    %v557 = vshrl.u32 %v556, 7
    %v558 = vsub.s32 0, %v557
    %v559 = vrot.slane %v544, %v558
    %v560 = vlaneseq
    %v561 = vshrl.u32 %v560, 7
    %v562 = vsub.s32 0, %v561
    %v563 = vrot.slane %v548, %v562
    %v692 = vunpack.c.l.b16 %v405
    %v693 = vunpack.c.h.b16 %v405
    %v694 = vunpack.c.l.b16 %v406
    %v695 = vunpack.c.l.b16 %v407
    %v696 = vunpack.c.h.b16 %v407
    %v697 = vunpack.c.l.b16 %v408
    %v698 = vunpack.c.l.b16 %v409
    %v699 = vunpack.c.h.b16 %v409
    %v700 = vunpack.c.l.b16 %v410
    %v701 = vunpack.c.l.b16 %v411
    %v702 = vunpack.c.h.b16 %v411
    %v703 = vunpack.c.l.b16 %v412
    %v704 = vunpack.c.l.b16 %v413
    %v705 = vunpack.c.h.b16 %v413
    %v706 = vunpack.c.l.b16 %v414
    %v707 = vunpack.c.l.b16 %v415
    %v708 = vunpack.c.h.b16 %v415
    %v709 = vunpack.c.l.b16 %v416
    %v710 = vunpack.c.l.b16 %v417
    %v711 = vunpack.c.h.b16 %v417
    %v712 = vunpack.c.l.b16 %v418
    %v713 = vunpack.c.l.b16 %v419
    %v714 = vunpack.c.h.b16 %v419
    %v715 = vunpack.c.l.b16 %v420
    %v716 = vunpack.c.l.b16 %v421
    %v717 = vunpack.c.h.b16 %v421
    %v718 = vunpack.c.l.b16 %v422
    %v719 = vunpack.c.l.b16 %v423
    %v720 = vunpack.c.h.b16 %v423
    %v721 = vunpack.c.l.b16 %v424
    %v722 = vunpack.c.l.b16 %v425
    %v723 = vunpack.c.h.b16 %v425
    %v724 = vunpack.c.l.b16 %v426
    %v725 = vunpack.c.l.b16 %v427
    %v726 = vunpack.c.h.b16 %v427
    %v727 = vunpack.c.l.b16 %v428
    %v728 = vunpack.c.l.b16 %v429
    %v729 = vunpack.c.h.b16 %v429
    %v730 = vunpack.c.l.b16 %v430
    %v731 = vunpack.c.l.b16 %v431
    %v732 = vunpack.c.h.b16 %v431
    %v733 = vunpack.c.l.b16 %v432
    %v734 = vunpack.c.l.b16 %v433
    %v735 = vunpack.c.h.b16 %v433
    %v736 = vunpack.c.l.b16 %v434
    %v737 = vunpack.c.l.b16 %v435
    %v738 = vunpack.c.h.b16 %v435
    %v739 = vunpack.c.l.b16 %v436
    %v740 = vunpack.c.l.b16 %v437
    %v741 = vunpack.c.h.b16 %v437
    %v742 = vunpack.c.l.b16 %v438
    %v743 = vunpack.c.l.b16 %v439
    %v744 = vunpack.c.h.b16 %v439
    %v745 = vunpack.c.l.b16 %v440
    %v746 = vunpack.c.l.b16 %v441
    %v747 = vunpack.c.h.b16 %v441
    %v748 = vunpack.c.l.b16 %v442
    %v749 = vunpack.c.l.b16 %v443
    %v750 = vunpack.c.h.b16 %v443
    %v751 = vunpack.c.l.b16 %v444
    %v752 = vunpack.c.l.b16 %v445
    %v753 = vunpack.c.h.b16 %v445
    %v754 = vunpack.c.l.b16 %v446
    %v755 = vunpack.c.l.b16 %v447
    %v756 = vunpack.c.h.b16 %v447
    %v757 = vunpack.c.l.b16 %v448
    %v758 = vunpack.c.l.b16 %v449
    %v759 = vunpack.c.h.b16 %v449
    %v760 = vunpack.c.l.b16 %v450
    %v761 = vunpack.c.l.b16 %v451
    %v762 = vunpack.c.h.b16 %v451
    %v763 = vunpack.c.l.b16 %v452
    %v764 = vunpack.c.l.b16 %v453
    %v765 = vunpack.c.h.b16 %v453
    %v766 = vunpack.c.l.b16 %v454
    %v767 = vunpack.c.l.b16 %v455
    %v768 = vunpack.c.h.b16 %v455
    %v769 = vunpack.c.l.b16 %v456
    %v770 = vunpack.c.l.b16 %v457
    %v771 = vunpack.c.h.b16 %v457
    %v772 = vunpack.c.l.b16 %v458
    %v773 = vunpack.c.l.b16 %v459
    %v774 = vunpack.c.h.b16 %v459
    %v775 = vunpack.c.l.b16 %v460
    %v776 = vunpack.c.l.b16 %v461
    %v777 = vunpack.c.h.b16 %v461
    %v778 = vunpack.c.l.b16 %v462
    %v779 = vunpack.c.l.b16 %v463
    %v780 = vunpack.c.h.b16 %v463
    %v781 = vunpack.c.l.b16 %v464
    %v782 = vunpack.c.l.b16 %v465
    %v783 = vunpack.c.h.b16 %v465
    %v784 = vunpack.c.l.b16 %v466
    %v785 = vunpack.c.l.b16 %v467
    %v786 = vunpack.c.h.b16 %v467
    %v787 = vunpack.c.l.b16 %v468
    %v788 = vunpack.c.l.b16 %v469
    %v789 = vunpack.c.h.b16 %v469
    %v790 = vunpack.c.l.b16 %v470
    %v791 = vunpack.c.l.b16 %v471
    %v792 = vunpack.c.h.b16 %v471
    %v793 = vunpack.c.l.b16 %v472
    %v794 = vunpack.c.l.b16 %v473
    %v795 = vunpack.c.h.b16 %v473
    %v796 = vunpack.c.l.b16 %v474
    %v797 = vunpack.c.l.b16 %v475
    %v798 = vunpack.c.h.b16 %v475
    %v799 = vunpack.c.l.b16 %v476
    %v800 = vunpack.c.l.b16 %v477
    %v801 = vunpack.c.h.b16 %v477
    %v802 = vunpack.c.l.b16 %v478
    %v803 = vunpack.c.l.b16 %v479
    %v804 = vunpack.c.h.b16 %v479
    %v805 = vunpack.c.l.b16 %v480
    %v806 = vunpack.c.l.b16 %v481
    %v807 = vunpack.c.h.b16 %v481
    %v808 = vunpack.c.l.b16 %v482
    %v809 = vunpack.c.l.b16 %v483
    %v810 = vunpack.c.h.b16 %v483
    %v811 = vunpack.c.l.b16 %v484
    %v812 = vunpack.c.l.b16 %v485
    %v813 = vunpack.c.h.b16 %v485
    %v814 = vunpack.c.l.b16 %v486
    %v815 = vunpack.c.l.b16 %v487
    %v816 = vunpack.c.h.b16 %v487
    %v817 = vunpack.c.l.b16 %v488
    %v818 = vunpack.c.l.b16 %v489
    %v819 = vunpack.c.h.b16 %v489
    %v820 = vunpack.c.l.b16 %v490
    %v821 = vunpack.c.l.b16 %v491
    %v822 = vunpack.c.h.b16 %v491
    %v823 = vunpack.c.l.b16 %v492
    %v824 = vunpack.c.l.b16 %v493
    %v825 = vunpack.c.h.b16 %v493
    %v826 = vunpack.c.l.b16 %v494
    %v827 = vunpack.c.l.b16 %v495
    %v828 = vunpack.c.h.b16 %v495
    %v829 = vunpack.c.l.b16 %v496
    %v830 = vunpack.c.l.b16 %v497
    %v831 = vunpack.c.h.b16 %v497
    %v832 = vunpack.c.l.b16 %v498
    %v833 = vunpack.c.l.b16 %v499
    %v834 = vunpack.c.h.b16 %v499
    %v835 = vunpack.c.l.b16 %v500
    %v836 = vunpack.c.l.b16 %v501
    %v837 = vunpack.c.h.b16 %v501
    %v838 = vunpack.c.l.b16 %v502
    %v839 = vunpack.c.l.b16 %v503
    %v840 = vunpack.c.h.b16 %v503
    %v841 = vunpack.c.l.b16 %v504
    %v842 = vunpack.c.l.b16 %v505
    %v843 = vunpack.c.h.b16 %v505
    %v844 = vunpack.c.l.b16 %v506
    %v845 = vunpack.c.l.b16 %v507
    %v846 = vunpack.c.h.b16 %v507
    %v847 = vunpack.c.l.b16 %v508
    %v848 = vunpack.c.l.b16 %v509
    %v849 = vunpack.c.h.b16 %v509
    %v850 = vunpack.c.l.b16 %v510
    %v851 = vunpack.c.l.b16 %v511
    %v852 = vunpack.c.h.b16 %v511
    %v853 = vunpack.c.l.b16 %v512
    %v854 = vunpack.c.l.b16 %v513
    %v855 = vunpack.c.h.b16 %v513
    %v856 = vunpack.c.l.b16 %v514
    %v857 = vunpack.c.l.b16 %v515
    %v858 = vunpack.c.h.b16 %v515
    %v859 = vunpack.c.l.b16 %v516
    %v860 = vunpack.c.l.b16 %v517
    %v861 = vunpack.c.h.b16 %v517
    %v862 = vunpack.c.l.b16 %v518
    %v863 = vunpack.c.l.b16 %v519
    %v864 = vunpack.c.h.b16 %v519
    %v865 = vunpack.c.l.b16 %v520
    %v866 = vunpack.c.l.b16 %v521
    %v867 = vunpack.c.h.b16 %v521
    %v868 = vunpack.c.l.b16 %v522
    %v869 = vunpack.c.l.b16 %v523
    %v870 = vunpack.c.h.b16 %v523
    %v871 = vunpack.c.l.b16 %v524
    %v872 = vunpack.c.l.b16 %v525
    %v873 = vunpack.c.h.b16 %v525
    %v874 = vunpack.c.l.b16 %v526
    %v875 = vunpack.c.l.b16 %v527
    %v876 = vunpack.c.h.b16 %v527
    %v877 = vunpack.c.l.b16 %v528
    %v878 = vunpack.c.l.b16 %v529
    %v879 = vunpack.c.h.b16 %v529
    %v880 = vunpack.c.l.b16 %v530
    %v881 = vunpack.c.l.b16 %v531
    %v882 = vunpack.c.h.b16 %v531
    %v883 = vunpack.c.l.b16 %v532
    %v884 = vpack.c.b16 %v695, %v692
    %v885 = vpack.c.b16 %v696, %v693
    %v886 = vpack.c.b16 %v697, %v694
    %v887 = vpack.c.b16 %v701, %v698
    %v888 = vpack.c.b16 %v702, %v699
    %v889 = vpack.c.b16 %v703, %v700
    %v890 = vpack.c.b16 %v707, %v704
    %v891 = vpack.c.b16 %v708, %v705
    %v892 = vpack.c.b16 %v709, %v706
    %v893 = vpack.c.b16 %v713, %v710
    %v894 = vpack.c.b16 %v714, %v711
    %v895 = vpack.c.b16 %v715, %v712
    %v896 = vpack.c.b16 %v719, %v716
    %v897 = vpack.c.b16 %v720, %v717
    %v898 = vpack.c.b16 %v721, %v718
    %v899 = vpack.c.b16 %v725, %v722
    %v900 = vpack.c.b16 %v726, %v723
    %v901 = vpack.c.b16 %v727, %v724
    %v902 = vpack.c.b16 %v731, %v728
    %v903 = vpack.c.b16 %v732, %v729
    %v904 = vpack.c.b16 %v733, %v730
    %v905 = vpack.c.b16 %v737, %v734
    %v906 = vpack.c.b16 %v738, %v735
    %v907 = vpack.c.b16 %v739, %v736
    %v908 = vpack.c.b16 %v743, %v740
    %v909 = vpack.c.b16 %v744, %v741
    %v910 = vpack.c.b16 %v745, %v742
    %v911 = vpack.c.b16 %v749, %v746
    %v912 = vpack.c.b16 %v750, %v747
    %v913 = vpack.c.b16 %v751, %v748
    %v914 = vpack.c.b16 %v755, %v752
    %v915 = vpack.c.b16 %v756, %v753
    %v916 = vpack.c.b16 %v757, %v754
    %v917 = vpack.c.b16 %v761, %v758
    %v918 = vpack.c.b16 %v762, %v759
    %v919 = vpack.c.b16 %v763, %v760
    %v920 = vpack.c.b16 %v767, %v764
    %v921 = vpack.c.b16 %v768, %v765
    %v922 = vpack.c.b16 %v769, %v766
    %v923 = vpack.c.b16 %v773, %v770
    %v924 = vpack.c.b16 %v774, %v771
    %v925 = vpack.c.b16 %v775, %v772
    %v926 = vpack.c.b16 %v779, %v776
    %v927 = vpack.c.b16 %v780, %v777
    %v928 = vpack.c.b16 %v781, %v778
    %v929 = vpack.c.b16 %v785, %v782
    %v930 = vpack.c.b16 %v786, %v783
    %v931 = vpack.c.b16 %v787, %v784
    %v932 = vpack.c.b16 %v791, %v788
    %v933 = vpack.c.b16 %v792, %v789
    %v934 = vpack.c.b16 %v793, %v790
    %v935 = vpack.c.b16 %v797, %v794
    %v936 = vpack.c.b16 %v798, %v795
    %v937 = vpack.c.b16 %v799, %v796
    %v938 = vpack.c.b16 %v803, %v800
    %v939 = vpack.c.b16 %v804, %v801
    %v940 = vpack.c.b16 %v805, %v802
    %v941 = vpack.c.b16 %v809, %v806
    %v942 = vpack.c.b16 %v810, %v807
    %v943 = vpack.c.b16 %v811, %v808
    %v944 = vpack.c.b16 %v815, %v812
    %v945 = vpack.c.b16 %v816, %v813
    %v946 = vpack.c.b16 %v817, %v814
    %v947 = vpack.c.b16 %v821, %v818
    %v948 = vpack.c.b16 %v822, %v819
    %v949 = vpack.c.b16 %v823, %v820
    %v950 = vpack.c.b16 %v827, %v824
    %v951 = vpack.c.b16 %v828, %v825
    %v952 = vpack.c.b16 %v829, %v826
    %v953 = vpack.c.b16 %v833, %v830
    %v954 = vpack.c.b16 %v834, %v831
    %v955 = vpack.c.b16 %v835, %v832
    %v956 = vpack.c.b16 %v839, %v836
    %v957 = vpack.c.b16 %v840, %v837
    %v958 = vpack.c.b16 %v841, %v838
    %v959 = vpack.c.b16 %v845, %v842
    %v960 = vpack.c.b16 %v846, %v843
    %v961 = vpack.c.b16 %v847, %v844
    %v962 = vpack.c.b16 %v851, %v848
    %v963 = vpack.c.b16 %v852, %v849
    %v964 = vpack.c.b16 %v853, %v850
    %v965 = vpack.c.b16 %v857, %v854
    %v966 = vpack.c.b16 %v858, %v855
    %v967 = vpack.c.b16 %v859, %v856
    %v968 = vpack.c.b16 %v863, %v860
    %v969 = vpack.c.b16 %v864, %v861
    %v970 = vpack.c.b16 %v865, %v862
    %v971 = vpack.c.b16 %v869, %v866
    %v972 = vpack.c.b16 %v870, %v867
    %v973 = vpack.c.b16 %v871, %v868
    %v974 = vpack.c.b16 %v875, %v872
    %v975 = vpack.c.b16 %v876, %v873
    %v976 = vpack.c.b16 %v877, %v874
    %v977 = vpack.c.b16 %v881, %v878
    %v978 = vpack.c.b16 %v882, %v879
    %v979 = vpack.c.b16 %v883, %v880
    %1076 = vmatprep.subr.bf16.mxu0 %v885
    %1077 = vmatpush1.bf16.msra.mxu0 %v884
    %1078 = vmatprep.subr.bf16.mxu0 %v888
    %1079 = vmatpush1.bf16.msra.mxu0 %v887
    %1080 = vmatprep.subr.bf16.mxu0 %v891
    %1081 = vmatpush1.bf16.msra.mxu0 %v890
    %1082 = vmatprep.subr.bf16.mxu0 %v894
    %1083 = vmatpush1.bf16.msra.mxu0 %v893
    %1084 = vmatprep.subr.bf16.mxu0 %v897
    %1085 = vmatpush1.bf16.msra.mxu0 %v896
    %1086 = vmatprep.subr.bf16.mxu0 %v900
    %1087 = vmatpush1.bf16.msra.mxu0 %v899
    %1088 = vmatprep.subr.bf16.mxu0 %v903
    %1089 = vmatpush1.bf16.msra.mxu0 %v902
    %1090 = vmatprep.subr.bf16.mxu0 %v906
    %1091 = vmatpush1.bf16.msra.mxu0 %v905
    %1092 = vmatprep.subr.bf16.mxu0 %v909
    %1093 = vmatpush1.bf16.msra.mxu0 %v908
    %1094 = vmatprep.subr.bf16.mxu0 %v912
    %1095 = vmatpush1.bf16.msra.mxu0 %v911
    %1096 = vmatprep.subr.bf16.mxu0 %v915
    %1097 = vmatpush1.bf16.msra.mxu0 %v914
    %1098 = vmatprep.subr.bf16.mxu0 %v918
    %1099 = vmatpush1.bf16.msra.mxu0 %v917
    %1100 = vmatprep.subr.bf16.mxu0 %v921
    %1101 = vmatpush1.bf16.msra.mxu0 %v920
    %1102 = vmatprep.subr.bf16.mxu0 %v924
    %1103 = vmatpush1.bf16.msra.mxu0 %v923
    %1104 = vmatprep.subr.bf16.mxu0 %v927
    %1105 = vmatpush1.bf16.msra.mxu0 %v926
    %1106 = vmatprep.subr.bf16.mxu0 %v930
    %1107 = vmatpush1.bf16.msra.mxu0 %v929
    %1108 = vmatprep.mubr.bf16.mxu0 %v402
    %1109 = vmatmul.mubr.bf16.gmra.mrb[0].mxu0 %v401
    %v1110 = vpop.f32.mrb[0].mxu0
    %v1111 = vadd.f32 %v555, %v1110
    %v1112 = vpop.f32.mrb[0].mxu0
    %v1113 = vadd.f32 %v559, %v1112
    %v1114 = vpop.f32.mrb[0].mxu0
    %v1115 = vpop.f32.mrb[0].mxu0
    %1116 = vdwg.mxu0
    %1117 = vmatprep.subr.bf16.mxu0 %v933
    %1118 = vmatpush1.bf16.msra.mxu0 %v932
    %1119 = vmatprep.subr.bf16.mxu0 %v936
    %1120 = vmatpush1.bf16.msra.mxu0 %v935
    %1121 = vmatprep.subr.bf16.mxu0 %v939
    %1122 = vmatpush1.bf16.msra.mxu0 %v938
    %1123 = vmatprep.subr.bf16.mxu0 %v942
    %1124 = vmatpush1.bf16.msra.mxu0 %v941
    %1125 = vmatprep.subr.bf16.mxu0 %v945
    %1126 = vmatpush1.bf16.msra.mxu0 %v944
    %1127 = vmatprep.subr.bf16.mxu0 %v948
    %1128 = vmatpush1.bf16.msra.mxu0 %v947
    %1129 = vmatprep.subr.bf16.mxu0 %v951
    %1130 = vmatpush1.bf16.msra.mxu0 %v950
    %1131 = vmatprep.subr.bf16.mxu0 %v954
    %1132 = vmatpush1.bf16.msra.mxu0 %v953
    %1133 = vmatprep.subr.bf16.mxu0 %v957
    %1134 = vmatpush1.bf16.msra.mxu0 %v956
    %1135 = vmatprep.subr.bf16.mxu0 %v960
    %1136 = vmatpush1.bf16.msra.mxu0 %v959
    %1137 = vmatprep.subr.bf16.mxu0 %v963
    %1138 = vmatpush1.bf16.msra.mxu0 %v962
    %1139 = vmatprep.subr.bf16.mxu0 %v966
    %1140 = vmatpush1.bf16.msra.mxu0 %v965
    %1141 = vmatprep.subr.bf16.mxu0 %v969
    %1142 = vmatpush1.bf16.msra.mxu0 %v968
    %1143 = vmatprep.subr.bf16.mxu0 %v972
    %1144 = vmatpush1.bf16.msra.mxu0 %v971
    %1145 = vmatprep.subr.bf16.mxu0 %v975
    %1146 = vmatpush1.bf16.msra.mxu0 %v974
    %1147 = vmatprep.subr.bf16.mxu0 %v978
    %1148 = vmatpush1.bf16.msra.mxu0 %v977
    %1149 = vmatprep.mubr.bf16.mxu0 %v404
    %1150 = vmatmul.mubr.bf16.gmra.mrb[0].mxu0 %v403
    %v1151 = vpop.f32.mrb[0].mxu0
    %v1152 = vadd.f32 %v1111, %v1151
    %v1153 = vpop.f32.mrb[0].mxu0
    %v1154 = vadd.f32 %v1113, %v1153
    %v1155 = vpop.f32.mrb[0].mxu0
    %v1156 = vpop.f32.mrb[0].mxu0
    %1157 = vdwg.mxu0
    %1158 = vmatprep.subr.bf16.mxu0 0
    %1159 = vmatpush1.bf16.msra.mxu0 %v886
    %1160 = vmatprep.subr.bf16.mxu0 0
    %1161 = vmatpush1.bf16.msra.mxu0 %v889
    %1162 = vmatprep.subr.bf16.mxu0 0
    %1163 = vmatpush1.bf16.msra.mxu0 %v892
    %1164 = vmatprep.subr.bf16.mxu0 0
    %1165 = vmatpush1.bf16.msra.mxu0 %v895
    %1166 = vmatprep.subr.bf16.mxu0 0
    %1167 = vmatpush1.bf16.msra.mxu0 %v898
    %1168 = vmatprep.subr.bf16.mxu0 0
    %1169 = vmatpush1.bf16.msra.mxu0 %v901
    %1170 = vmatprep.subr.bf16.mxu0 0
    %1171 = vmatpush1.bf16.msra.mxu0 %v904
    %1172 = vmatprep.subr.bf16.mxu0 0
    %1173 = vmatpush1.bf16.msra.mxu0 %v907
    %1174 = vmatprep.subr.bf16.mxu0 0
    %1175 = vmatpush1.bf16.msra.mxu0 %v910
    %1176 = vmatprep.subr.bf16.mxu0 0
    %1177 = vmatpush1.bf16.msra.mxu0 %v913
    %1178 = vmatprep.subr.bf16.mxu0 0
    %1179 = vmatpush1.bf16.msra.mxu0 %v916
    %1180 = vmatprep.subr.bf16.mxu0 0
    %1181 = vmatpush1.bf16.msra.mxu0 %v919
    %1182 = vmatprep.subr.bf16.mxu0 0
    %1183 = vmatpush1.bf16.msra.mxu0 %v922
    %1184 = vmatprep.subr.bf16.mxu0 0
    %1185 = vmatpush1.bf16.msra.mxu0 %v925
    %1186 = vmatprep.subr.bf16.mxu0 0
    %1187 = vmatpush1.bf16.msra.mxu0 %v928
    %1188 = vmatprep.subr.bf16.mxu0 0
    %1189 = vmatpush1.bf16.msra.mxu0 %v931
    %1190 = vmatprep.mubr.bf16.mxu0 %v402
    %1191 = vmatmul.mubr.bf16.gmra.mrb[0].mxu0 %v401
    %v1192 = vpop.f32.mrb[0].mxu0
    %v1193 = vadd.f32 %v563, %v1192
    %v1194 = vpop.f32.mrb[0].mxu0
    %v1195 = vpop.f32.mrb[0].mxu0
    %v1196 = vpop.f32.mrb[0].mxu0
    %1197 = vdwg.mxu0
    %1198 = vmatprep.subr.bf16.mxu0 0
    %1199 = vmatpush1.bf16.msra.mxu0 %v934
    %1200 = vmatprep.subr.bf16.mxu0 0
    %1201 = vmatpush1.bf16.msra.mxu0 %v937
    %1202 = vmatprep.subr.bf16.mxu0 0
    %1203 = vmatpush1.bf16.msra.mxu0 %v940
    %1204 = vmatprep.subr.bf16.mxu0 0
    %1205 = vmatpush1.bf16.msra.mxu0 %v943
    %1206 = vmatprep.subr.bf16.mxu0 0
    %1207 = vmatpush1.bf16.msra.mxu0 %v946
    %1208 = vmatprep.subr.bf16.mxu0 0
    %1209 = vmatpush1.bf16.msra.mxu0 %v949
    %1210 = vmatprep.subr.bf16.mxu0 0
    %1211 = vmatpush1.bf16.msra.mxu0 %v952
    %1212 = vmatprep.subr.bf16.mxu0 0
    %1213 = vmatpush1.bf16.msra.mxu0 %v955
    %1214 = vmatprep.subr.bf16.mxu0 0
    %1215 = vmatpush1.bf16.msra.mxu0 %v958
    %1216 = vmatprep.subr.bf16.mxu0 0
    %1217 = vmatpush1.bf16.msra.mxu0 %v961
    %1218 = vmatprep.subr.bf16.mxu0 0
    %1219 = vmatpush1.bf16.msra.mxu0 %v964
    %1220 = vmatprep.subr.bf16.mxu0 0
    %1221 = vmatpush1.bf16.msra.mxu0 %v967
    %1222 = vmatprep.subr.bf16.mxu0 0
    %1223 = vmatpush1.bf16.msra.mxu0 %v970
    %1224 = vmatprep.subr.bf16.mxu0 0
    %1225 = vmatpush1.bf16.msra.mxu0 %v973
    %1226 = vmatprep.subr.bf16.mxu0 0
    %1227 = vmatpush1.bf16.msra.mxu0 %v976
    %1228 = vmatprep.subr.bf16.mxu0 0
    %1229 = vmatpush1.bf16.msra.mxu0 %v979
    %1230 = vmatprep.mubr.bf16.mxu0 %v404
    %1231 = vmatmul.mubr.bf16.gmra.mrb[0].mxu0 %v403
    %v1232 = vpop.f32.mrb[0].mxu0
    %v1233 = vadd.f32 %v1193, %v1232
    %v1234 = vpop.f32.mrb[0].mxu0
    %v1235 = vpop.f32.mrb[0].mxu0
    %v1236 = vpop.f32.mrb[0].mxu0
    %1237 = vdwg.mxu0
    %v1238 = vadd.f32 %v1152, %v1154
    %v1239 = vadd.f32 %v1238, %v1233
    %1240 = vadd.xlane.f32.xlu0 %v1239
    %v1241 = vpop.xlane.xlu0 %1240
    %v1242 = vrcp.pop 384.0
    %v1243 = vmul.f32 %v1241, %v1242
    %v1244 = vmul.f32 %v1152, %v1152
    %v1245 = vmul.f32 %v1154, %v1154
    %v1246 = vmul.f32 %v1233, %v1233
    %v1247 = vadd.f32 %v1244, %v1245
    %v1248 = vadd.f32 %v1247, %v1246
    %1249 = vadd.xlane.f32.xlu0 %v1248
    %v1250 = vpop.xlane.xlu0 %1249
    %v1251 = vmul.f32 %v1250, %v1242
    %v1252 = vmul.f32 %v1243, %v1243
    %v1253 = vsub.f32 %v1251, %v1252
    %v1254 = vmax.f32 %v1253, 0.0
    %v1255 = vsub.f32 %v1152, %v1243
    %v1256 = vsub.f32 %v1154, %v1243
    %v1257 = vsub.f32 %v1233, %v1243
    %v1258 = vadd.f32 %v1254, 1e-05
    %v1259 = vrsqrt.pop %v1258
    %v1260 = vmul.f32 %v1255, %v1259
    %v1261 = vmul.f32 %v1256, %v1259
    %v1262 = vmul.f32 %v1257, %v1259
    %v1263 = vlaneseq
    %v1264 = vshrl.u32 %v1263, 7
    %v1265 = vsub.s32 1, %v1264
    %v1266 = vrot.slane %v533, %v1265
    %v1267 = vlaneseq
    %v1268 = vshrl.u32 %v1267, 7
    %v1269 = vsub.s32 5, %v1268
    %v1270 = vrot.slane %v533, %v1269
    %v1271 = vlaneseq
    %v1272 = vshrl.u32 %v1271, 7
    %v1273 = vsub.s32 1, %v1272
    %v1274 = vrot.slane %v534, %v1273
    %v1278 = vlaneseq
    %v1279 = vshrl.u32 %v1278, 7
    %v1280 = vsub.s32 1, %v1279
    %v1281 = vrot.slane %v1266, %v1280
    %v1282 = vlaneseq
    %v1283 = vshrl.u32 %v1282, 7
    %v1284 = vsub.s32 1, %v1283
    %v1285 = vrot.slane %v1270, %v1284
    %v1286 = vlaneseq
    %v1287 = vshrl.u32 %v1286, 7
    %v1288 = vsub.s32 1, %v1287
    %v1289 = vrot.slane %v1274, %v1288
    %v1290 = vmul.f32 %v1260, %v1281
    %v1291 = vmul.f32 %v1261, %v1285
    %v1292 = vmul.f32 %v1262, %v1289
    %v1293 = vlaneseq
    %v1294 = vshrl.u32 %v1293, 7
    %v1295 = vsub.s32 2, %v1294
    %v1296 = vrot.slane %v533, %v1295
    %v1297 = vlaneseq
    %v1298 = vshrl.u32 %v1297, 7
    %v1299 = vsub.s32 6, %v1298
    %v1300 = vrot.slane %v533, %v1299
    %v1301 = vlaneseq
    %v1302 = vshrl.u32 %v1301, 7
    %v1303 = vsub.s32 2, %v1302
    %v1304 = vrot.slane %v534, %v1303
    %v1308 = vlaneseq
    %v1309 = vshrl.u32 %v1308, 7
    %v1310 = vsub.s32 2, %v1309
    %v1311 = vrot.slane %v1296, %v1310
    %v1312 = vlaneseq
    %v1313 = vshrl.u32 %v1312, 7
    %v1314 = vsub.s32 2, %v1313
    %v1315 = vrot.slane %v1300, %v1314
    %v1316 = vlaneseq
    %v1317 = vshrl.u32 %v1316, 7
    %v1318 = vsub.s32 2, %v1317
    %v1319 = vrot.slane %v1304, %v1318
    %v1320 = vadd.f32 %v1290, %v1311
    %v1321 = vadd.f32 %v1291, %v1315
    %v1322 = vadd.f32 %v1292, %v1319
    %v1323 = vmul.f32 %v1320, 0.01
    %v1324 = vmul.f32 %v1321, 0.01
    %v1325 = vmul.f32 %v1322, 0.01
    %v1326 = vmax.f32 %v1320, %v1323
    %v1327 = vmax.f32 %v1321, %v1324
    %v1328 = vmax.f32 %v1322, %v1325
    %v1329 = vpack.c.bf16 %v1326, %v1326
    %v1330 = vpack.c.bf16 %v1327, %v1327
    %v1331 = vpack.c.bf16 %v1328, %v1328
    %v1332 = vld [vmem:[#allocation10] sm:$0xff]
    %v1333 = vld [vmem:[#allocation10 + $0x8] sm:$0xff]
    %v1334 = vld [vmem:[#allocation10 + $0x10] sm:$0xff]
    %v1335 = vld [vmem:[#allocation10 + $0x18] sm:$0xff]
    %v1336 = vld [vmem:[#allocation10 + $0x20] sm:$0xff]
    %v1337 = vld [vmem:[#allocation10 + $0x28] sm:$0xff]
    %v1338 = vld [vmem:[#allocation10 + $0x30] sm:$0xff]
    %v1339 = vld [vmem:[#allocation10 + $0x38] sm:$0xff]
    %v1340 = vld [vmem:[#allocation10 + $0x40] sm:$0xff]
    %v1341 = vld [vmem:[#allocation10 + $0x48] sm:$0xff]
    %v1342 = vld [vmem:[#allocation10 + $0x50] sm:$0xff]
    %v1343 = vld [vmem:[#allocation10 + $0x58] sm:$0xff]
    %v1344 = vld [vmem:[#allocation10 + $0x60] sm:$0xff]
    %v1345 = vld [vmem:[#allocation10 + $0x68] sm:$0xff]
    %v1346 = vld [vmem:[#allocation10 + $0x70] sm:$0xff]
    %v1347 = vld [vmem:[#allocation10 + $0x78] sm:$0xff]
    %v1348 = vld [vmem:[#allocation10 + $0x80] sm:$0xff]
    %v1349 = vld [vmem:[#allocation10 + $0x88] sm:$0xff]
    %v1350 = vld [vmem:[#allocation10 + $0x90] sm:$0xff]
    %v1351 = vld [vmem:[#allocation10 + $0x98] sm:$0xff]
    %v1352 = vld [vmem:[#allocation10 + $0xa0] sm:$0xff]
    %v1353 = vld [vmem:[#allocation10 + $0xa8] sm:$0xff]
    %v1354 = vld [vmem:[#allocation10 + $0xb0] sm:$0xff]
    %v1355 = vld [vmem:[#allocation10 + $0xb8] sm:$0xff]
    %v1356 = vld [vmem:[#allocation10 + $0xc0] sm:$0xff]
    %v1357 = vld [vmem:[#allocation10 + $0xc8] sm:$0xff]
    %v1358 = vld [vmem:[#allocation10 + $0xd0] sm:$0xff]
    %v1359 = vld [vmem:[#allocation10 + $0xd8] sm:$0xff]
    %v1360 = vld [vmem:[#allocation10 + $0xe0] sm:$0xff]
    %v1361 = vld [vmem:[#allocation10 + $0xe8] sm:$0xff]
    %v1362 = vld [vmem:[#allocation10 + $0xf0] sm:$0xff]
    %v1363 = vld [vmem:[#allocation10 + $0xf8] sm:$0xff]
    %v1364 = vld [vmem:[#allocation10 + $0x100] sm:$0xff]
    %v1365 = vld [vmem:[#allocation10 + $0x108] sm:$0xff]
    %v1366 = vld [vmem:[#allocation10 + $0x110] sm:$0xff]
    %v1367 = vld [vmem:[#allocation10 + $0x118] sm:$0xff]
    %v1368 = vld [vmem:[#allocation10 + $0x120] sm:$0xff]
    %v1369 = vld [vmem:[#allocation10 + $0x128] sm:$0xff]
    %v1370 = vld [vmem:[#allocation10 + $0x130] sm:$0xff]
    %v1371 = vld [vmem:[#allocation10 + $0x138] sm:$0xff]
    %v1372 = vld [vmem:[#allocation10 + $0x140] sm:$0xff]
    %v1373 = vld [vmem:[#allocation10 + $0x148] sm:$0xff]
    %v1374 = vld [vmem:[#allocation10 + $0x150] sm:$0xff]
    %v1375 = vld [vmem:[#allocation10 + $0x158] sm:$0xff]
    %v1376 = vld [vmem:[#allocation10 + $0x160] sm:$0xff]
    %v1377 = vld [vmem:[#allocation10 + $0x168] sm:$0xff]
    %v1378 = vld [vmem:[#allocation10 + $0x170] sm:$0xff]
    %v1379 = vld [vmem:[#allocation10 + $0x178] sm:$0xff]
    %v1380 = vld [vmem:[%s6] sm:$0x77]
    %v1382 = vlaneseq
    %v1383 = vshrl.u32 %v1382, 7
    %v1384 = vsub.s32 0, %v1383
    %v1385 = vrot.slane %v1380, %v1384
    %v1386 = vlaneseq
    %v1387 = vshrl.u32 %v1386, 7
    %v1388 = vsub.s32 4, %v1387
    %v1389 = vrot.slane %v1380, %v1388
    %v1392 = vlaneseq
    %v1393 = vshrl.u32 %v1392, 7
    %v1394 = vsub.s32 0, %v1393
    %v1395 = vrot.slane %v1385, %v1394
    %v1396 = vlaneseq
    %v1397 = vshrl.u32 %v1396, 7
    %v1398 = vsub.s32 0, %v1397
    %v1399 = vrot.slane %v1389, %v1398
    %v1448 = vunpack.c.l.b16 %v1332
    %v1449 = vunpack.c.h.b16 %v1332
    %v1450 = vunpack.c.l.b16 %v1333
    %v1451 = vunpack.c.h.b16 %v1333
    %v1452 = vunpack.c.l.b16 %v1334
    %v1453 = vunpack.c.h.b16 %v1334
    %v1454 = vunpack.c.l.b16 %v1335
    %v1455 = vunpack.c.h.b16 %v1335
    %v1456 = vunpack.c.l.b16 %v1336
    %v1457 = vunpack.c.h.b16 %v1336
    %v1458 = vunpack.c.l.b16 %v1337
    %v1459 = vunpack.c.h.b16 %v1337
    %v1460 = vunpack.c.l.b16 %v1338
    %v1461 = vunpack.c.h.b16 %v1338
    %v1462 = vunpack.c.l.b16 %v1339
    %v1463 = vunpack.c.h.b16 %v1339
    %v1464 = vunpack.c.l.b16 %v1340
    %v1465 = vunpack.c.h.b16 %v1340
    %v1466 = vunpack.c.l.b16 %v1341
    %v1467 = vunpack.c.h.b16 %v1341
    %v1468 = vunpack.c.l.b16 %v1342
    %v1469 = vunpack.c.h.b16 %v1342
    %v1470 = vunpack.c.l.b16 %v1343
    %v1471 = vunpack.c.h.b16 %v1343
    %v1472 = vunpack.c.l.b16 %v1344
    %v1473 = vunpack.c.h.b16 %v1344
    %v1474 = vunpack.c.l.b16 %v1345
    %v1475 = vunpack.c.h.b16 %v1345
    %v1476 = vunpack.c.l.b16 %v1346
    %v1477 = vunpack.c.h.b16 %v1346
    %v1478 = vunpack.c.l.b16 %v1347
    %v1479 = vunpack.c.h.b16 %v1347
    %v1480 = vunpack.c.l.b16 %v1348
    %v1481 = vunpack.c.h.b16 %v1348
    %v1482 = vunpack.c.l.b16 %v1349
    %v1483 = vunpack.c.h.b16 %v1349
    %v1484 = vunpack.c.l.b16 %v1350
    %v1485 = vunpack.c.h.b16 %v1350
    %v1486 = vunpack.c.l.b16 %v1351
    %v1487 = vunpack.c.h.b16 %v1351
    %v1488 = vunpack.c.l.b16 %v1352
    %v1489 = vunpack.c.h.b16 %v1352
    %v1490 = vunpack.c.l.b16 %v1353
    %v1491 = vunpack.c.h.b16 %v1353
    %v1492 = vunpack.c.l.b16 %v1354
    %v1493 = vunpack.c.h.b16 %v1354
    %v1494 = vunpack.c.l.b16 %v1355
    %v1495 = vunpack.c.h.b16 %v1355
    %v1496 = vunpack.c.l.b16 %v1356
    %v1497 = vunpack.c.h.b16 %v1356
    %v1498 = vunpack.c.l.b16 %v1357
    %v1499 = vunpack.c.h.b16 %v1357
    %v1500 = vunpack.c.l.b16 %v1358
    %v1501 = vunpack.c.h.b16 %v1358
    %v1502 = vunpack.c.l.b16 %v1359
    %v1503 = vunpack.c.h.b16 %v1359
    %v1504 = vunpack.c.l.b16 %v1360
    %v1505 = vunpack.c.h.b16 %v1360
    %v1506 = vunpack.c.l.b16 %v1361
    %v1507 = vunpack.c.h.b16 %v1361
    %v1508 = vunpack.c.l.b16 %v1362
    %v1509 = vunpack.c.h.b16 %v1362
    %v1510 = vunpack.c.l.b16 %v1363
    %v1511 = vunpack.c.h.b16 %v1363
    %v1512 = vunpack.c.l.b16 %v1364
    %v1513 = vunpack.c.h.b16 %v1364
    %v1514 = vunpack.c.l.b16 %v1365
    %v1515 = vunpack.c.h.b16 %v1365
    %v1516 = vunpack.c.l.b16 %v1366
    %v1517 = vunpack.c.h.b16 %v1366
    %v1518 = vunpack.c.l.b16 %v1367
    %v1519 = vunpack.c.h.b16 %v1367
    %v1520 = vunpack.c.l.b16 %v1368
    %v1521 = vunpack.c.h.b16 %v1368
    %v1522 = vunpack.c.l.b16 %v1369
    %v1523 = vunpack.c.h.b16 %v1369
    %v1524 = vunpack.c.l.b16 %v1370
    %v1525 = vunpack.c.h.b16 %v1370
    %v1526 = vunpack.c.l.b16 %v1371
    %v1527 = vunpack.c.h.b16 %v1371
    %v1528 = vunpack.c.l.b16 %v1372
    %v1529 = vunpack.c.h.b16 %v1372
    %v1530 = vunpack.c.l.b16 %v1373
    %v1531 = vunpack.c.h.b16 %v1373
    %v1532 = vunpack.c.l.b16 %v1374
    %v1533 = vunpack.c.h.b16 %v1374
    %v1534 = vunpack.c.l.b16 %v1375
    %v1535 = vunpack.c.h.b16 %v1375
    %v1536 = vunpack.c.l.b16 %v1376
    %v1537 = vunpack.c.h.b16 %v1376
    %v1538 = vunpack.c.l.b16 %v1377
    %v1539 = vunpack.c.h.b16 %v1377
    %v1540 = vunpack.c.l.b16 %v1378
    %v1541 = vunpack.c.h.b16 %v1378
    %v1542 = vunpack.c.l.b16 %v1379
    %v1543 = vunpack.c.h.b16 %v1379
    %v1544 = vpack.c.b16 %v1450, %v1448
    %v1545 = vpack.c.b16 %v1451, %v1449
    %v1546 = vpack.c.b16 %v1454, %v1452
    %v1547 = vpack.c.b16 %v1455, %v1453
    %v1548 = vpack.c.b16 %v1458, %v1456
    %v1549 = vpack.c.b16 %v1459, %v1457
    %v1550 = vpack.c.b16 %v1462, %v1460
    %v1551 = vpack.c.b16 %v1463, %v1461
    %v1552 = vpack.c.b16 %v1466, %v1464
    %v1553 = vpack.c.b16 %v1467, %v1465
    %v1554 = vpack.c.b16 %v1470, %v1468
    %v1555 = vpack.c.b16 %v1471, %v1469
    %v1556 = vpack.c.b16 %v1474, %v1472
    %v1557 = vpack.c.b16 %v1475, %v1473
    %v1558 = vpack.c.b16 %v1478, %v1476
    %v1559 = vpack.c.b16 %v1479, %v1477
    %v1560 = vpack.c.b16 %v1482, %v1480
    %v1561 = vpack.c.b16 %v1483, %v1481
    %v1562 = vpack.c.b16 %v1486, %v1484
    %v1563 = vpack.c.b16 %v1487, %v1485
    %v1564 = vpack.c.b16 %v1490, %v1488
    %v1565 = vpack.c.b16 %v1491, %v1489
    %v1566 = vpack.c.b16 %v1494, %v1492
    %v1567 = vpack.c.b16 %v1495, %v1493
    %v1568 = vpack.c.b16 %v1498, %v1496
    %v1569 = vpack.c.b16 %v1499, %v1497
    %v1570 = vpack.c.b16 %v1502, %v1500
    %v1571 = vpack.c.b16 %v1503, %v1501
    %v1572 = vpack.c.b16 %v1506, %v1504
    %v1573 = vpack.c.b16 %v1507, %v1505
    %v1574 = vpack.c.b16 %v1510, %v1508
    %v1575 = vpack.c.b16 %v1511, %v1509
    %v1576 = vpack.c.b16 %v1514, %v1512
    %v1577 = vpack.c.b16 %v1515, %v1513
    %v1578 = vpack.c.b16 %v1518, %v1516
    %v1579 = vpack.c.b16 %v1519, %v1517
    %v1580 = vpack.c.b16 %v1522, %v1520
    %v1581 = vpack.c.b16 %v1523, %v1521
    %v1582 = vpack.c.b16 %v1526, %v1524
    %v1583 = vpack.c.b16 %v1527, %v1525
    %v1584 = vpack.c.b16 %v1530, %v1528
    %v1585 = vpack.c.b16 %v1531, %v1529
    %v1586 = vpack.c.b16 %v1534, %v1532
    %v1587 = vpack.c.b16 %v1535, %v1533
    %v1588 = vpack.c.b16 %v1538, %v1536
    %v1589 = vpack.c.b16 %v1539, %v1537
    %v1590 = vpack.c.b16 %v1542, %v1540
    %v1591 = vpack.c.b16 %v1543, %v1541
    %1640 = vmatprep.subr.bf16.mxu0 %v1545
    %1641 = vmatpush1.bf16.msra.mxu0 %v1544
    %1642 = vmatprep.subr.bf16.mxu0 %v1547
    %1643 = vmatpush1.bf16.msra.mxu0 %v1546
    %1644 = vmatprep.subr.bf16.mxu0 %v1549
    %1645 = vmatpush1.bf16.msra.mxu0 %v1548
    %1646 = vmatprep.subr.bf16.mxu0 %v1551
    %1647 = vmatpush1.bf16.msra.mxu0 %v1550
    %1648 = vmatprep.subr.bf16.mxu0 %v1553
    %1649 = vmatpush1.bf16.msra.mxu0 %v1552
    %1650 = vmatprep.subr.bf16.mxu0 %v1555
    %1651 = vmatpush1.bf16.msra.mxu0 %v1554
    %1652 = vmatprep.subr.bf16.mxu0 %v1557
    %1653 = vmatpush1.bf16.msra.mxu0 %v1556
    %1654 = vmatprep.subr.bf16.mxu0 %v1559
    %1655 = vmatpush1.bf16.msra.mxu0 %v1558
    %1656 = vmatprep.subr.bf16.mxu0 %v1561
    %1657 = vmatpush1.bf16.msra.mxu0 %v1560
    %1658 = vmatprep.subr.bf16.mxu0 %v1563
    %1659 = vmatpush1.bf16.msra.mxu0 %v1562
    %1660 = vmatprep.subr.bf16.mxu0 %v1565
    %1661 = vmatpush1.bf16.msra.mxu0 %v1564
    %1662 = vmatprep.subr.bf16.mxu0 %v1567
    %1663 = vmatpush1.bf16.msra.mxu0 %v1566
    %1664 = vmatprep.subr.bf16.mxu0 %v1569
    %1665 = vmatpush1.bf16.msra.mxu0 %v1568
    %1666 = vmatprep.subr.bf16.mxu0 %v1571
    %1667 = vmatpush1.bf16.msra.mxu0 %v1570
    %1668 = vmatprep.subr.bf16.mxu0 %v1573
    %1669 = vmatpush1.bf16.msra.mxu0 %v1572
    %1670 = vmatprep.subr.bf16.mxu0 %v1575
    %1671 = vmatpush1.bf16.msra.mxu0 %v1574
    %1672 = vmatprep.mubr.bf16.mxu0 %v1330
    %1673 = vmatmul.mubr.bf16.gmra.mrb[0].mxu0 %v1329
    %v1674 = vpop.f32.mrb[0].mxu0
    %v1675 = vadd.f32 %v1395, %v1674
    %v1676 = vpop.f32.mrb[0].mxu0
    %v1677 = vadd.f32 %v1399, %v1676
    %v1678 = vpop.f32.mrb[0].mxu0
    %v1679 = vpop.f32.mrb[0].mxu0
    %1680 = vdwg.mxu0
    %1681 = vmatprep.subr.bf16.mxu0 %v1577
    %1682 = vmatpush1.bf16.msra.mxu0 %v1576
    %1683 = vmatprep.subr.bf16.mxu0 %v1579
    %1684 = vmatpush1.bf16.msra.mxu0 %v1578
    %1685 = vmatprep.subr.bf16.mxu0 %v1581
    %1686 = vmatpush1.bf16.msra.mxu0 %v1580
    %1687 = vmatprep.subr.bf16.mxu0 %v1583
    %1688 = vmatpush1.bf16.msra.mxu0 %v1582
    %1689 = vmatprep.subr.bf16.mxu0 %v1585
    %1690 = vmatpush1.bf16.msra.mxu0 %v1584
    %1691 = vmatprep.subr.bf16.mxu0 %v1587
    %1692 = vmatpush1.bf16.msra.mxu0 %v1586
    %1693 = vmatprep.subr.bf16.mxu0 %v1589
    %1694 = vmatpush1.bf16.msra.mxu0 %v1588
    %1695 = vmatprep.subr.bf16.mxu0 %v1591
    %1696 = vmatpush1.bf16.msra.mxu0 %v1590
    %1697 = vmatprep.subr.bf16.mxu0 0
    %1698 = vmatpush1.bf16.msra.mxu0 0
    %1699 = vmatprep.subr.bf16.mxu0 0
    %1700 = vmatpush1.bf16.msra.mxu0 0
    %1701 = vmatprep.subr.bf16.mxu0 0
    %1702 = vmatpush1.bf16.msra.mxu0 0
    %1703 = vmatprep.subr.bf16.mxu0 0
    %1704 = vmatpush1.bf16.msra.mxu0 0
    %1705 = vmatprep.subr.bf16.mxu0 0
    %1706 = vmatpush1.bf16.msra.mxu0 0
    %1707 = vmatprep.subr.bf16.mxu0 0
    %1708 = vmatpush1.bf16.msra.mxu0 0
    %1709 = vmatprep.subr.bf16.mxu0 0
    %1710 = vmatpush1.bf16.msra.mxu0 0
    %1711 = vmatprep.subr.bf16.mxu0 0
    %1712 = vmatpush1.bf16.msra.mxu0 0
    %1713 = vmatprep.mubr.bf16.mxu0 0
    %1714 = vmatmul.mubr.bf16.gmra.mrb[0].mxu0 %v1331
    %v1715 = vpop.f32.mrb[0].mxu0
    %v1716 = vadd.f32 %v1675, %v1715
    %v1717 = vpop.f32.mrb[0].mxu0
    %v1718 = vadd.f32 %v1677, %v1717
    %v1719 = vpop.f32.mrb[0].mxu0
    %v1720 = vpop.f32.mrb[0].mxu0
    %1721 = vdwg.mxu0
    %v1722 = vadd.f32 %v1716, %v1718
    %1723 = vadd.xlane.f32.xlu0 %v1722
    %v1724 = vpop.xlane.xlu0 %1723
    %v1725 = vrcp.pop 256.0
    %v1726 = vmul.f32 %v1724, %v1725
    %v1727 = vmul.f32 %v1716, %v1716
    %v1728 = vmul.f32 %v1718, %v1718
    %v1729 = vadd.f32 %v1727, %v1728
    %1730 = vadd.xlane.f32.xlu0 %v1729
    %v1731 = vpop.xlane.xlu0 %1730
    %v1732 = vmul.f32 %v1731, %v1725
    %v1733 = vmul.f32 %v1726, %v1726
    %v1734 = vsub.f32 %v1732, %v1733
    %v1735 = vmax.f32 %v1734, 0.0
    %v1736 = vsub.f32 %v1716, %v1726
    %v1737 = vsub.f32 %v1718, %v1726
    %v1738 = vadd.f32 %v1735, 1e-05
    %v1739 = vrsqrt.pop %v1738
    %v1740 = vmul.f32 %v1736, %v1739
    %v1741 = vmul.f32 %v1737, %v1739
    %v1742 = vlaneseq
    %v1743 = vshrl.u32 %v1742, 7
    %v1744 = vsub.s32 1, %v1743
    %v1745 = vrot.slane %v1380, %v1744
    %v1746 = vlaneseq
    %v1747 = vshrl.u32 %v1746, 7
    %v1748 = vsub.s32 5, %v1747
    %v1749 = vrot.slane %v1380, %v1748
    %v1752 = vlaneseq
    %v1753 = vshrl.u32 %v1752, 7
    %v1754 = vsub.s32 1, %v1753
    %v1755 = vrot.slane %v1745, %v1754
    %v1756 = vlaneseq
    %v1757 = vshrl.u32 %v1756, 7
    %v1758 = vsub.s32 1, %v1757
    %v1759 = vrot.slane %v1749, %v1758
    %v1760 = vmul.f32 %v1740, %v1755
    %v1761 = vmul.f32 %v1741, %v1759
    %v1762 = vlaneseq
    %v1763 = vshrl.u32 %v1762, 7
    %v1764 = vsub.s32 2, %v1763
    %v1765 = vrot.slane %v1380, %v1764
    %v1766 = vlaneseq
    %v1767 = vshrl.u32 %v1766, 7
    %v1768 = vsub.s32 6, %v1767
    %v1769 = vrot.slane %v1380, %v1768
    %v1772 = vlaneseq
    %v1773 = vshrl.u32 %v1772, 7
    %v1774 = vsub.s32 2, %v1773
    %v1775 = vrot.slane %v1765, %v1774
    %v1776 = vlaneseq
    %v1777 = vshrl.u32 %v1776, 7
    %v1778 = vsub.s32 2, %v1777
    %v1779 = vrot.slane %v1769, %v1778
    %v1780 = vadd.f32 %v1760, %v1775
    %v1781 = vadd.f32 %v1761, %v1779
    %v1782 = vmul.f32 %v1780, 0.01
    %v1783 = vmul.f32 %v1781, 0.01
    %v1784 = vmax.f32 %v1780, %v1782
    %v1785 = vmax.f32 %v1781, %v1783
    %v1786 = vpack.c.bf16 %v1784, %v1784
    %v1787 = vpack.c.bf16 %v1785, %v1785
    %v1788 = vld [vmem:[#allocation11] sm:$0xf]
    %v1789 = vld [vmem:[#allocation11 + $0x4] sm:$0xf]
    %v1790 = vld [vmem:[#allocation11 + $0x8] sm:$0xf]
    %v1791 = vld [vmem:[#allocation11 + $0xc] sm:$0xf]
    %v1792 = vld [vmem:[#allocation11 + $0x10] sm:$0xf]
    %v1793 = vld [vmem:[#allocation11 + $0x14] sm:$0xf]
    %v1794 = vld [vmem:[#allocation11 + $0x18] sm:$0xf]
    %v1795 = vld [vmem:[#allocation11 + $0x1c] sm:$0xf]
    %v1796 = vld [vmem:[#allocation11 + $0x20] sm:$0xf]
    %v1797 = vld [vmem:[#allocation11 + $0x24] sm:$0xf]
    %v1798 = vld [vmem:[#allocation11 + $0x28] sm:$0xf]
    %v1799 = vld [vmem:[#allocation11 + $0x2c] sm:$0xf]
    %v1800 = vld [vmem:[#allocation11 + $0x30] sm:$0xf]
    %v1801 = vld [vmem:[#allocation11 + $0x34] sm:$0xf]
    %v1802 = vld [vmem:[#allocation11 + $0x38] sm:$0xf]
    %v1803 = vld [vmem:[#allocation11 + $0x3c] sm:$0xf]
    %v1804 = vld [vmem:[#allocation11 + $0x40] sm:$0xf]
    %v1805 = vld [vmem:[#allocation11 + $0x44] sm:$0xf]
    %v1806 = vld [vmem:[#allocation11 + $0x48] sm:$0xf]
    %v1807 = vld [vmem:[#allocation11 + $0x4c] sm:$0xf]
    %v1808 = vld [vmem:[#allocation11 + $0x50] sm:$0xf]
    %v1809 = vld [vmem:[#allocation11 + $0x54] sm:$0xf]
    %v1810 = vld [vmem:[#allocation11 + $0x58] sm:$0xf]
    %v1811 = vld [vmem:[#allocation11 + $0x5c] sm:$0xf]
    %v1812 = vld [vmem:[#allocation11 + $0x60] sm:$0xf]
    %v1813 = vld [vmem:[#allocation11 + $0x64] sm:$0xf]
    %v1814 = vld [vmem:[#allocation11 + $0x68] sm:$0xf]
    %v1815 = vld [vmem:[#allocation11 + $0x6c] sm:$0xf]
    %v1816 = vld [vmem:[#allocation11 + $0x70] sm:$0xf]
    %v1817 = vld [vmem:[#allocation11 + $0x74] sm:$0xf]
    %v1818 = vld [vmem:[#allocation11 + $0x78] sm:$0xf]
    %v1819 = vld [vmem:[#allocation11 + $0x7c] sm:$0xf]
    %v1820 = vld [vmem:[%s8] sm:$0x7]
    %v1821 = vlaneseq
    %v1822 = vshrl.u32 %v1821, 7
    %v1823 = vsub.s32 0, %v1822
    %v1824 = vrot.slane %v1820, %v1823
    %v1857 = vunpack.c.l.b16 %v1788
    %v1858 = vunpack.c.l.b16 %v1789
    %v1859 = vunpack.c.l.b16 %v1790
    %v1860 = vunpack.c.l.b16 %v1791
    %v1861 = vunpack.c.l.b16 %v1792
    %v1862 = vunpack.c.l.b16 %v1793
    %v1863 = vunpack.c.l.b16 %v1794
    %v1864 = vunpack.c.l.b16 %v1795
    %v1865 = vunpack.c.l.b16 %v1796
    %v1866 = vunpack.c.l.b16 %v1797
    %v1867 = vunpack.c.l.b16 %v1798
    %v1868 = vunpack.c.l.b16 %v1799
    %v1869 = vunpack.c.l.b16 %v1800
    %v1870 = vunpack.c.l.b16 %v1801
    %v1871 = vunpack.c.l.b16 %v1802
    %v1872 = vunpack.c.l.b16 %v1803
    %v1873 = vunpack.c.l.b16 %v1804
    %v1874 = vunpack.c.l.b16 %v1805
    %v1875 = vunpack.c.l.b16 %v1806
    %v1876 = vunpack.c.l.b16 %v1807
    %v1877 = vunpack.c.l.b16 %v1808
    %v1878 = vunpack.c.l.b16 %v1809
    %v1879 = vunpack.c.l.b16 %v1810
    %v1880 = vunpack.c.l.b16 %v1811
    %v1881 = vunpack.c.l.b16 %v1812
    %v1882 = vunpack.c.l.b16 %v1813
    %v1883 = vunpack.c.l.b16 %v1814
    %v1884 = vunpack.c.l.b16 %v1815
    %v1885 = vunpack.c.l.b16 %v1816
    %v1886 = vunpack.c.l.b16 %v1817
    %v1887 = vunpack.c.l.b16 %v1818
    %v1888 = vunpack.c.l.b16 %v1819
    %v1889 = vpack.c.b16 %v1858, %v1857
    %v1890 = vpack.c.b16 %v1860, %v1859
    %v1891 = vpack.c.b16 %v1862, %v1861
    %v1892 = vpack.c.b16 %v1864, %v1863
    %v1893 = vpack.c.b16 %v1866, %v1865
    %v1894 = vpack.c.b16 %v1868, %v1867
    %v1895 = vpack.c.b16 %v1870, %v1869
    %v1896 = vpack.c.b16 %v1872, %v1871
    %v1897 = vpack.c.b16 %v1874, %v1873
    %v1898 = vpack.c.b16 %v1876, %v1875
    %v1899 = vpack.c.b16 %v1878, %v1877
    %v1900 = vpack.c.b16 %v1880, %v1879
    %v1901 = vpack.c.b16 %v1882, %v1881
    %v1902 = vpack.c.b16 %v1884, %v1883
    %v1903 = vpack.c.b16 %v1886, %v1885
    %v1904 = vpack.c.b16 %v1888, %v1887
    %1921 = vmatprep.subr.bf16.mxu0 0
    %1922 = vmatpush1.bf16.msra.mxu0 %v1889
    %1923 = vmatprep.subr.bf16.mxu0 0
    %1924 = vmatpush1.bf16.msra.mxu0 %v1890
    %1925 = vmatprep.subr.bf16.mxu0 0
    %1926 = vmatpush1.bf16.msra.mxu0 %v1891
    %1927 = vmatprep.subr.bf16.mxu0 0
    %1928 = vmatpush1.bf16.msra.mxu0 %v1892
    %1929 = vmatprep.subr.bf16.mxu0 0
    %1930 = vmatpush1.bf16.msra.mxu0 %v1893
    %1931 = vmatprep.subr.bf16.mxu0 0
    %1932 = vmatpush1.bf16.msra.mxu0 %v1894
    %1933 = vmatprep.subr.bf16.mxu0 0
    %1934 = vmatpush1.bf16.msra.mxu0 %v1895
    %1935 = vmatprep.subr.bf16.mxu0 0
    %1936 = vmatpush1.bf16.msra.mxu0 %v1896
    %1937 = vmatprep.subr.bf16.mxu0 0
    %1938 = vmatpush1.bf16.msra.mxu0 %v1897
    %1939 = vmatprep.subr.bf16.mxu0 0
    %1940 = vmatpush1.bf16.msra.mxu0 %v1898
    %1941 = vmatprep.subr.bf16.mxu0 0
    %1942 = vmatpush1.bf16.msra.mxu0 %v1899
    %1943 = vmatprep.subr.bf16.mxu0 0
    %1944 = vmatpush1.bf16.msra.mxu0 %v1900
    %1945 = vmatprep.subr.bf16.mxu0 0
    %1946 = vmatpush1.bf16.msra.mxu0 %v1901
    %1947 = vmatprep.subr.bf16.mxu0 0
    %1948 = vmatpush1.bf16.msra.mxu0 %v1902
    %1949 = vmatprep.subr.bf16.mxu0 0
    %1950 = vmatpush1.bf16.msra.mxu0 %v1903
    %1951 = vmatprep.subr.bf16.mxu0 0
    %1952 = vmatpush1.bf16.msra.mxu0 %v1904
    %1953 = vmatprep.mubr.bf16.mxu0 %v1787
    %1954 = vmatmul.mubr.bf16.gmra.mrb[0].mxu0 %v1786
    %v1955 = vpop.f32.mrb[0].mxu0
    %v1956 = vadd.f32 %v1824, %v1955
    %v1957 = vpop.f32.mrb[0].mxu0
    %v1958 = vpop.f32.mrb[0].mxu0
    %v1959 = vpop.f32.mrb[0].mxu0
    %1960 = vdwg.mxu0
    %1961 = vadd.xlane.f32.xlu0 %v1956
    %v1962 = vpop.xlane.xlu0 %1961
    %v1963 = vrcp.pop 128.0
    %v1964 = vmul.f32 %v1962, %v1963
    %v1965 = vmul.f32 %v1956, %v1956
    %1966 = vadd.xlane.f32.xlu0 %v1965
    %v1967 = vpop.xlane.xlu0 %1966
    %v1968 = vmul.f32 %v1967, %v1963
    %v1969 = vmul.f32 %v1964, %v1964
    %v1970 = vsub.f32 %v1968, %v1969
    %v1971 = vmax.f32 %v1970, 0.0
    %v1972 = vsub.f32 %v1956, %v1964
    %v1973 = vadd.f32 %v1971, 1e-05
    %v1974 = vrsqrt.pop %v1973
    %v1975 = vmul.f32 %v1972, %v1974
    %v1976 = vlaneseq
    %v1977 = vshrl.u32 %v1976, 7
    %v1978 = vsub.s32 1, %v1977
    %v1979 = vrot.slane %v1820, %v1978
    %v1980 = vmul.f32 %v1975, %v1979
    %v1981 = vlaneseq
    %v1982 = vshrl.u32 %v1981, 7
    %v1983 = vsub.s32 2, %v1982
    %v1984 = vrot.slane %v1820, %v1983
    %v1985 = vadd.f32 %v1980, %v1984
    %v1986 = vmul.f32 %v1985, 0.01
    %v1987 = vmax.f32 %v1985, %v1986
    %v1988 = vpack.c.bf16 %v1987, %v1987
    %v1989 = vld [vmem:[#allocation13] sm:$0xf]
    %v1990 = vld [vmem:[#allocation13 + $0x4] sm:$0xf]
    %v1991 = vld [vmem:[#allocation13 + $0x8] sm:$0xf]
    %v1992 = vld [vmem:[#allocation13 + $0xc] sm:$0xf]
    %v1993 = vld [vmem:[#allocation13 + $0x10] sm:$0xf]
    %v1994 = vld [vmem:[#allocation13 + $0x14] sm:$0xf]
    %v1995 = vld [vmem:[#allocation13 + $0x18] sm:$0xf]
    %v1996 = vld [vmem:[#allocation13 + $0x1c] sm:$0xf]
    %v1997 = vld [vmem:[#allocation13 + $0x20] sm:$0xf]
    %v1998 = vld [vmem:[#allocation13 + $0x24] sm:$0xf]
    %v1999 = vld [vmem:[#allocation13 + $0x28] sm:$0xf]
    %v2000 = vld [vmem:[#allocation13 + $0x2c] sm:$0xf]
    %v2001 = vld [vmem:[#allocation13 + $0x30] sm:$0xf]
    %v2002 = vld [vmem:[#allocation13 + $0x34] sm:$0xf]
    %v2003 = vld [vmem:[#allocation13 + $0x38] sm:$0xf]
    %v2004 = vld [vmem:[#allocation13 + $0x3c] sm:$0xf]
    %v2005 = vld [vmem:[%s10] sm:$0x1]
    %v2007 = vlaneseq
    %v2008 = vshrl.u32 %v2007, 7
    %v2009 = vsub.s32 0, %v2008
    %v2010 = vrot.slane %v2005, %v2009
    %v2028 = vunpack.c.l.b16 %v1989
    %v2029 = vunpack.c.l.b16 %v1990
    %v2030 = vunpack.c.l.b16 %v1991
    %v2031 = vunpack.c.l.b16 %v1992
    %v2032 = vunpack.c.l.b16 %v1993
    %v2033 = vunpack.c.l.b16 %v1994
    %v2034 = vunpack.c.l.b16 %v1995
    %v2035 = vunpack.c.l.b16 %v1996
    %v2036 = vunpack.c.l.b16 %v1997
    %v2037 = vunpack.c.l.b16 %v1998
    %v2038 = vunpack.c.l.b16 %v1999
    %v2039 = vunpack.c.l.b16 %v2000
    %v2040 = vunpack.c.l.b16 %v2001
    %v2041 = vunpack.c.l.b16 %v2002
    %v2042 = vunpack.c.l.b16 %v2003
    %v2043 = vunpack.c.l.b16 %v2004
    %v2044 = vpack.c.b16 %v2029, %v2028
    %v2045 = vpack.c.b16 %v2031, %v2030
    %v2046 = vpack.c.b16 %v2033, %v2032
    %v2047 = vpack.c.b16 %v2035, %v2034
    %v2048 = vpack.c.b16 %v2037, %v2036
    %v2049 = vpack.c.b16 %v2039, %v2038
    %v2050 = vpack.c.b16 %v2041, %v2040
    %v2051 = vpack.c.b16 %v2043, %v2042
    %2060 = vmatprep.subr.bf16.mxu0 0
    %2061 = vmatpush1.bf16.msra.mxu0 %v2044
    %2062 = vmatprep.subr.bf16.mxu0 0
    %2063 = vmatpush1.bf16.msra.mxu0 %v2045
    %2064 = vmatprep.subr.bf16.mxu0 0
    %2065 = vmatpush1.bf16.msra.mxu0 %v2046
    %2066 = vmatprep.subr.bf16.mxu0 0
    %2067 = vmatpush1.bf16.msra.mxu0 %v2047
    %2068 = vmatprep.subr.bf16.mxu0 0
    %2069 = vmatpush1.bf16.msra.mxu0 %v2048
    %2070 = vmatprep.subr.bf16.mxu0 0
    %2071 = vmatpush1.bf16.msra.mxu0 %v2049
    %2072 = vmatprep.subr.bf16.mxu0 0
    %2073 = vmatpush1.bf16.msra.mxu0 %v2050
    %2074 = vmatprep.subr.bf16.mxu0 0
    %2075 = vmatpush1.bf16.msra.mxu0 %v2051
    %2076 = vmatprep.subr.bf16.mxu0 0
    %2077 = vmatpush1.bf16.msra.mxu0 0
    %2078 = vmatprep.subr.bf16.mxu0 0
    %2079 = vmatpush1.bf16.msra.mxu0 0
    %2080 = vmatprep.subr.bf16.mxu0 0
    %2081 = vmatpush1.bf16.msra.mxu0 0
    %2082 = vmatprep.subr.bf16.mxu0 0
    %2083 = vmatpush1.bf16.msra.mxu0 0
    %2084 = vmatprep.subr.bf16.mxu0 0
    %2085 = vmatpush1.bf16.msra.mxu0 0
    %2086 = vmatprep.subr.bf16.mxu0 0
    %2087 = vmatpush1.bf16.msra.mxu0 0
    %2088 = vmatprep.subr.bf16.mxu0 0
    %2089 = vmatpush1.bf16.msra.mxu0 0
    %2090 = vmatprep.subr.bf16.mxu0 0
    %2091 = vmatpush1.bf16.msra.mxu0 0
    %2092 = vmatprep.mubr.bf16.mxu0 0
    %2093 = vmatmul.mubr.bf16.gmra.mrb[0].mxu0 %v1988
    %v2094 = vpop.f32.mrb[0].mxu0
    %v2095 = vadd.f32 %v2010, %v2094
    %v2096 = vpop.f32.mrb[0].mxu0
    %v2097 = vpop.f32.mrb[0].mxu0
    %v2098 = vpop.f32.mrb[0].mxu0
    %2099 = vdwg.mxu0
    %v2100 = vtanh.pop %v2095
    %v2101 = vmul.f32 %v2100, 2.0
    %2102 = vst [vmem:[#allocation14] sm:$0xff] %v2101
    // Predicated region
    $region74: #{tpu_custom_call.1} parent=1 // pred_check
      _
    $region75: #{tpu_custom_call.1} parent=1 // pred_check_branch
      %2104 = sbr.rel (0) target = $region77
    $region76: #{tpu_custom_call.1} parent=1 // pred_region
      %s2106 = ssub.s32 128, 128
      %2107 = vsyncadd [#allocation4], %s2106
      %s2109 = sshll.u32 [#allocation14], 4
      %s2110 = int_to_ptr.vmem [resolvable:$true] %s2109
      %2112 = dma.vmem_to_hbm [thread:$0]  %s2110, 128, %s11, [#allocation4]
    $region77: #{tpu_custom_call.1} parent=1 // pred_fallthru
      _
    // Predicated region
    $region78: #{tpu_custom_call.1} parent=1 // pred_check
      _
    $region79: #{tpu_custom_call.1} parent=1 // pred_check_branch
      %2114 = sbr.rel (0) target = $region81
    $region80: #{tpu_custom_call.1} parent=1 // pred_region
      %2115 = dma.done [#allocation4], 128
    $region81: #{tpu_custom_call.1} parent=1 // pred_fallthru
      _
    %2116 = vsyncpa [#allocation3], 1
    %2117 = vsyncpa [#allocation6], 1
    %2118 = vsyncpa [#allocation9], 1
    %2119 = vsyncpa [#allocation12], 1
    %2120 = vsyncpa [#allocation4], 1

</llo_original>
